<compile_context>
chip_gen: v7x
topology: tpu7x:2x2x1
jax: 0.10.0
libtpu: 0.0.40
codegen_flags: <defaults>
</compile_context>

<pallas_src>
import functools

import jax
import jax.numpy as jnp
from jax.experimental import pallas as pl
from jax.experimental.pallas import tpu as pltpu

BETA = 0.9
THRESHOLD = 1.0


def _round_up(n, m):
    return ((n + m - 1) // m) * m


def _vmem_bytes(bt, tc, dp, hp):
    """Estimated resident VMEM for one grid step (double-buffered pipeline)."""
    x_buf = 2 * tc * bt * dp * 2           # bf16 x chunk, double buffered
    w_buf = 2 * 2 * (dp * hp) * 2          # two bf16 weight mats, double buffered
    b_buf = 2 * (hp + dp) * 4              # f32 biases, double buffered
    mem_scr = bt * (hp + dp) * 4           # f32 membrane scratch
    out_buf = 2 * bt * dp * 4              # f32 output block, double buffered
    return x_buf + w_buf + b_buf + mem_scr + out_buf


def _pick_tiles(B, T, dp, hp, *, budget_bytes=36 * 1024 * 1024, max_bt=512):
    """VMEM-budget-aware (Bt, Tc) selection.

    Tc: largest divisor of T that is <= 32 (amortizes per-grid-step overhead);
        only shrunk if even Bt=8 does not fit the budget.
    Bt: divisor-aware (bounds batch padding waste to < one block) and, when
        B >= 16, guarantees >= 2 batch blocks so the 'parallel' batch axis can
        shard across v7x's two TensorCores. Shrunk first when over budget.
    """
    tc_cands = [d for d in range(min(T, 32), 0, -1) if T % d == 0]

    bt_cands = []
    n_blocks = 2 if B >= 16 else 1
    while True:
        bt = min(_round_up(pl.cdiv(B, n_blocks), 8), max_bt)
        if bt not in bt_cands:
            bt_cands.append(bt)
        if bt <= 8:
            break
        n_blocks *= 2

    for tc in tc_cands:
        for bt in bt_cands:
            if _vmem_bytes(bt, tc, dp, hp) <= budget_bytes:
                return bt, tc
    return 8, tc_cands[-1]


def _snn_kernel(x_ref, w_enc_ref, b_enc_ref, w_dec_ref, b_dec_ref,
                out_ref, mem_enc_ref, mem_dec_ref,
                *, beta, threshold, t_chunk):
    tc = pl.program_id(1)

    # utils.reset(encoder/decoder): zero membranes at the first time chunk of
    # each batch block (time is the inner grid axis).
    @pl.when(tc == 0)
    def _():
        mem_enc_ref[...] = jnp.zeros_like(mem_enc_ref)
        mem_dec_ref[...] = jnp.zeros_like(mem_dec_ref)

    # Loads hoisted out of the unrolled time loop.
    w_enc = w_enc_ref[...]                       # (Dp, Hp) bf16
    w_dec = w_dec_ref[...]                       # (Hp, Dp) bf16
    mem_e = mem_enc_ref[...]                     # (Bt, Hp) f32
    mem_d = mem_dec_ref[...]                     # (Bt, Dp) f32

    bt = mem_e.shape[0]
    # Bias broadcasts hoisted (JAX does not CSE broadcast_in_dim inside loops).
    b_enc_b = jnp.broadcast_to(b_enc_ref[...], (bt, w_enc.shape[1]))
    b_dec_b = jnp.broadcast_to(b_dec_ref[...], (bt, w_dec.shape[1]))

    # Reset terms for the first step of this chunk, re-derived from the
    # persisted membranes; within the loop the spike compare of step t is
    # reused as the reset of step t+1 (one compare per layer per step).
    reset_e = (mem_e > threshold).astype(jnp.float32)
    reset_d = (mem_d > threshold).astype(jnp.float32)

    # Static (unrolled) loop over the time chunk: 2 bf16 MXU matmuls + a few
    # f32 VPU ops per step, no per-step DMA, broadcast, or grid overhead.
    for i in range(t_chunk):
        x_t = x_ref[i]                                        # (Bt, Dp) bf16

        # ---- encoder: Linear + Leaky LIF (subtract reset) ---------------
        cur_e = jnp.dot(x_t, w_enc,
                        preferred_element_type=jnp.float32) + b_enc_b
        mem_e = beta * mem_e + cur_e - threshold * reset_e
        spk_cmp = mem_e > threshold
        spk_e = spk_cmp.astype(jnp.bfloat16)                  # exact 0/1
        reset_e = spk_cmp.astype(jnp.float32)

        # ---- decoder: Linear + Leaky LIF (membrane output) --------------
        cur_d = jnp.dot(spk_e, w_dec,
                        preferred_element_type=jnp.float32) + b_dec_b
        mem_d = beta * mem_d + cur_d - threshold * reset_d
        reset_d = (mem_d > threshold).astype(jnp.float32)

    mem_enc_ref[...] = mem_e
    mem_dec_ref[...] = mem_d

    # Decoder membrane of the LAST time step only.
    @pl.when(tc == pl.num_programs(1) - 1)
    def _():
        out_ref[...] = mem_d.astype(out_ref.dtype)


def snn_autoencoder_forward(x_btd, w_enc, b_enc, w_dec, b_dec,
                            *, beta=BETA, threshold=THRESHOLD):
    """x_btd: (B, T, D_in) float32, returns (B, D_in) float32."""
    B, T, D = x_btd.shape
    H = w_enc.shape[1]

    # Hardware-tile-aligned padded sizes. Zero padding is numerically exact:
    # padded rows/cols of weights & biases are zero, so padded lanes of the
    # membranes stay at 0 and never spike.
    Dp = _round_up(D, 128)                       # lane-dense in/out features
    Hp = _round_up(H, 128)
    Bt, Tc = _pick_tiles(B, T, Dp, Hp)           # VMEM-budget aware
    Bp = _round_up(B, Bt)
    n_tc = T // Tc

    # Time-major, bf16, zero-padded input: (T, Bp, Dp). The transpose rides on
    # the padding copy the wrapper already performs.
    xp = jnp.zeros((T, Bp, Dp), jnp.bfloat16).at[:, :B, :D].set(
        jnp.transpose(x_btd, (1, 0, 2)).astype(jnp.bfloat16))
    w_enc_p = jnp.zeros((Dp, Hp), jnp.bfloat16).at[:D, :H].set(
        w_enc.astype(jnp.bfloat16))
    b_enc_p = jnp.zeros((1, Hp), jnp.float32).at[:, :H].set(b_enc)
    w_dec_p = jnp.zeros((Hp, Dp), jnp.bfloat16).at[:H, :D].set(
        w_dec.astype(jnp.bfloat16))
    b_dec_p = jnp.zeros((1, Dp), jnp.float32).at[:, :D].set(b_dec)

    kernel = functools.partial(_snn_kernel, beta=beta, threshold=threshold,
                               t_chunk=Tc)

    vmem_limit = int(max(_vmem_bytes(Bt, Tc, Dp, Hp) + (8 << 20), 32 << 20))

    out_p = pl.pallas_call(
        kernel,
        out_shape=jax.ShapeDtypeStruct((Bp, Dp), jnp.float32),
        grid_spec=pltpu.PrefetchScalarGridSpec(
            num_scalar_prefetch=0,
            grid=(Bp // Bt, n_tc),               # (batch blocks, time chunks)
            in_specs=[
                pl.BlockSpec((Tc, Bt, Dp), lambda b, t: (t, b, 0)),  # x chunk
                pl.BlockSpec((Dp, Hp), lambda b, t: (0, 0)),         # W_enc
                pl.BlockSpec((1, Hp), lambda b, t: (0, 0)),          # b_enc
                pl.BlockSpec((Hp, Dp), lambda b, t: (0, 0)),         # W_dec
                pl.BlockSpec((1, Dp), lambda b, t: (0, 0)),          # b_dec
            ],
            out_specs=pl.BlockSpec((Bt, Dp), lambda b, t: (b, 0)),   # per-batch
            scratch_shapes=[
                pltpu.VMEM((Bt, Hp), jnp.float32),   # encoder membrane
                pltpu.VMEM((Bt, Dp), jnp.float32),   # decoder membrane
            ],
        ),
        compiler_params=pltpu.CompilerParams(
            dimension_semantics=("parallel", "arbitrary"),
            vmem_limit_bytes=vmem_limit,
        ),
    )(xp, w_enc_p, b_enc_p, w_dec_p, b_dec_p)

    return out_p[:B, :D]


def _reference_forward(x_btd, w_enc, b_enc, w_dec, b_dec,
                       *, beta=BETA, threshold=THRESHOLD):
    """Pure-JAX reference mirroring the kernel numerics (bf16 MXU operands,
    f32 accumulation, f32 LIF state) and the PyTorch/snnTorch forward."""
    B, T, D = x_btd.shape
    H = w_enc.shape[1]
    w_enc_bf = w_enc.astype(jnp.bfloat16)
    w_dec_bf = w_dec.astype(jnp.bfloat16)

    def step(carry, x_t):
        mem_e, mem_d = carry
        cur_e = jnp.dot(x_t.astype(jnp.bfloat16), w_enc_bf,
                        preferred_element_type=jnp.float32) + b_enc
        mem_e = beta * mem_e + cur_e - threshold * (mem_e > threshold).astype(jnp.float32)
        spk_e = (mem_e > threshold)
        cur_d = jnp.dot(spk_e.astype(jnp.bfloat16), w_dec_bf,
                        preferred_element_type=jnp.float32) + b_dec
        mem_d = beta * mem_d + cur_d - threshold * (mem_d > threshold).astype(jnp.float32)
        return (mem_e, mem_d), mem_d

    init = (jnp.zeros((B, H), jnp.float32), jnp.zeros((B, D), jnp.float32))
    (_, _), mem_rec = jax.lax.scan(step, init, jnp.transpose(x_btd, (1, 0, 2)))
    return mem_rec[-1]


def _init_linear(key, fan_in, fan_out):
    """Deterministic PyTorch-style nn.Linear init (uniform +/- 1/sqrt(fan_in))."""
    kw, kb = jax.random.split(key)
    bound = 1.0 / (fan_in ** 0.5)
    w = jax.random.uniform(kw, (fan_in, fan_out), jnp.float32, -bound, bound)
    b = jax.random.uniform(kb, (1, fan_out), jnp.float32, -bound, bound)
    return w, b


if __name__ == "__main__":
    B, T, D_IN, H = 2, 8, 32, 16

    key = jax.random.PRNGKey(0)
    k_x, k_enc, k_dec = jax.random.split(key, 3)

    # Input drawn like rate-coded spikes would be, but any real values work.
    x = jax.random.uniform(k_x, (B, T, D_IN), jnp.float32)  # (batch, time, feat)

    w_enc, b_enc = _init_linear(k_enc, D_IN, H)
    w_dec, b_dec = _init_linear(k_dec, H, D_IN)

    out = snn_autoencoder_forward(x, w_enc, b_enc, w_dec, b_dec)
    out = jax.block_until_ready(out)

    ref = _reference_forward(x, w_enc, b_enc, w_dec, b_dec)
    assert out.shape == (B, D_IN)
    assert jnp.allclose(out, ref, atol=1e-3, rtol=1e-3), (
        f"max abs err {jnp.max(jnp.abs(out - ref))}")

    print("KERNEL_OK")
</pallas_src>

<mosaic_0001>
module attributes {stable_mosaic.version = 11 : i64} {
  func.func @_snn_kernel(%arg0: i32, %arg1: i32, %arg2: memref<8x8x128xbf16, #tpu.memory_space<vmem>>, %arg3: memref<128x128xbf16, #tpu.memory_space<vmem>>, %arg4: memref<1x128xf32, #tpu.memory_space<vmem>>, %arg5: memref<128x128xbf16, #tpu.memory_space<vmem>>, %arg6: memref<1x128xf32, #tpu.memory_space<vmem>>, %arg7: memref<8x128xf32, #tpu.memory_space<vmem>>, %arg8: memref<8x128xf32, #tpu.memory_space<vmem>>, %arg9: memref<8x128xf32, #tpu.memory_space<vmem>>) attributes {dimension_semantics = [#tpu.dimension_semantics<parallel>, #tpu.dimension_semantics<arbitrary>], iteration_bounds = array<i64: 1, 1>, scalar_prefetch = 0 : i64, scratch_operands = 2 : i64, tpu.core_type = #tpu.core_type<tc>, window_params = [{transform_indices = @transform_0, window_bounds = array<i64: 8, 8, 128>}, {pipeline_mode = #tpu.pipeline_mode<synchronous>, transform_indices = @transform_1, window_bounds = array<i64: 128, 128>}, {pipeline_mode = #tpu.pipeline_mode<synchronous>, transform_indices = @transform_2, window_bounds = array<i64: 1, 128>}, {pipeline_mode = #tpu.pipeline_mode<synchronous>, transform_indices = @transform_3, window_bounds = array<i64: 128, 128>}, {pipeline_mode = #tpu.pipeline_mode<synchronous>, transform_indices = @transform_4, window_bounds = array<i64: 1, 128>}, {transform_indices = @transform_5, window_bounds = array<i64: 8, 128>}]} {
    %c0_i32 = arith.constant 0 : i32
    %0 = arith.cmpi eq, %arg1, %c0_i32 : i32
    %1 = arith.extui %0 : i1 to i32
    %c0_i32_0 = arith.constant 0 : i32
    %2 = arith.cmpi ne, %1, %c0_i32_0 : i32
    scf.if %2 {
      %cst_99 = arith.constant 0.000000e+00 : f32
      %252 = vector.broadcast %cst_99 : f32 to vector<8x128xf32>
      %c0_100 = arith.constant 0 : index
      %c0_101 = arith.constant 0 : index
      %253 = vector.load %arg8[%c0_100, %c0_101] : memref<8x128xf32, #tpu.memory_space<vmem>>, vector<8x128xf32>
      tpu.vector_store %arg8[%c0_100, %c0_101], %252 {strides = array<i32>} : memref<8x128xf32, #tpu.memory_space<vmem>>, vector<8x128xf32>,
      %cst_102 = arith.constant 0.000000e+00 : f32
      %254 = vector.broadcast %cst_102 : f32 to vector<8x128xf32>
      %c0_103 = arith.constant 0 : index
      %c0_104 = arith.constant 0 : index
      %255 = vector.load %arg9[%c0_103, %c0_104] : memref<8x128xf32, #tpu.memory_space<vmem>>, vector<8x128xf32>
      tpu.vector_store %arg9[%c0_103, %c0_104], %254 {strides = array<i32>} : memref<8x128xf32, #tpu.memory_space<vmem>>, vector<8x128xf32>,
    } else {
    }
    %c0 = arith.constant 0 : index
    %c0_1 = arith.constant 0 : index
    %3 = vector.load %arg3[%c0, %c0_1] : memref<128x128xbf16, #tpu.memory_space<vmem>>, vector<128x128xbf16>
    %c0_2 = arith.constant 0 : index
    %c0_3 = arith.constant 0 : index
    %4 = vector.load %arg5[%c0_2, %c0_3] : memref<128x128xbf16, #tpu.memory_space<vmem>>, vector<128x128xbf16>
    %c0_4 = arith.constant 0 : index
    %c0_5 = arith.constant 0 : index
    %5 = vector.load %arg8[%c0_4, %c0_5] : memref<8x128xf32, #tpu.memory_space<vmem>>, vector<8x128xf32>
    %c0_6 = arith.constant 0 : index
    %c0_7 = arith.constant 0 : index
    %6 = vector.load %arg9[%c0_6, %c0_7] : memref<8x128xf32, #tpu.memory_space<vmem>>, vector<8x128xf32>
    %c0_8 = arith.constant 0 : index
    %c0_9 = arith.constant 0 : index
    %7 = vector.load %arg4[%c0_8, %c0_9] : memref<1x128xf32, #tpu.memory_space<vmem>>, vector<1x128xf32>
    %8 = vector.shape_cast %7 : vector<1x128xf32> to vector<1x128xf32>
    %9 = vector.broadcast %8 : vector<1x128xf32> to vector<8x128xf32>
    %c0_10 = arith.constant 0 : index
    %c0_11 = arith.constant 0 : index
    %10 = vector.load %arg6[%c0_10, %c0_11] : memref<1x128xf32, #tpu.memory_space<vmem>>, vector<1x128xf32>
    %11 = vector.shape_cast %10 : vector<1x128xf32> to vector<1x128xf32>
    %12 = vector.broadcast %11 : vector<1x128xf32> to vector<8x128xf32>
    %cst = arith.constant 1.000000e+00 : f32
    %13 = vector.broadcast %cst : f32 to vector<8x128xf32>
    %14 = arith.cmpf ogt, %5, %13 : vector<8x128xf32>
    %15 = arith.extui %14 : vector<8x128xi1> to vector<8x128xi32>
    %16 = arith.sitofp %15 : vector<8x128xi32> to vector<8x128xf32>
    %cst_12 = arith.constant 1.000000e+00 : f32
    %17 = vector.broadcast %cst_12 : f32 to vector<8x128xf32>
    %18 = arith.cmpf ogt, %6, %17 : vector<8x128xf32>
    %19 = arith.extui %18 : vector<8x128xi1> to vector<8x128xi32>
    %20 = arith.sitofp %19 : vector<8x128xi32> to vector<8x128xf32>
    %c0_13 = arith.constant 0 : index
    %c0_14 = arith.constant 0 : index
    %c0_15 = arith.constant 0 : index
    %21 = vector.load %arg2[%c0_13, %c0_14, %c0_15] : memref<8x8x128xbf16, #tpu.memory_space<vmem>>, vector<1x8x128xbf16>
    %22 = vector.shape_cast %21 : vector<1x8x128xbf16> to vector<8x128xbf16>
    %cst_16 = arith.constant dense<0.000000e+00> : vector<8x128xf32>
    %23 = tpu.matmul %22, %3, %cst_16 {dimension_numbers = #tpu.dot_dimension_numbers<[1], [0], [0], [1], [0, 0, 1, 1], [], []>} : vector<8x128xbf16>, vector<128x128xbf16>, vector<8x128xf32> -> vector<8x128xf32>
    %24 = arith.addf %23, %9 : vector<8x128xf32>
    %cst_17 = arith.constant 0.899999976 : f32
    %25 = vector.broadcast %cst_17 : f32 to vector<8x128xf32>
    %26 = arith.mulf %25, %5 : vector<8x128xf32>
    %27 = arith.addf %26, %24 : vector<8x128xf32>
    %cst_18 = arith.constant 1.000000e+00 : f32
    %28 = vector.broadcast %cst_18 : f32 to vector<8x128xf32>
    %29 = arith.mulf %28, %16 : vector<8x128xf32>
    %30 = arith.subf %27, %29 : vector<8x128xf32>
    %cst_19 = arith.constant 1.000000e+00 : f32
    %31 = vector.broadcast %cst_19 : f32 to vector<8x128xf32>
    %32 = arith.cmpf ogt, %30, %31 : vector<8x128xf32>
    %33 = arith.extui %32 : vector<8x128xi1> to vector<8x128xi32>
    %34 = arith.sitofp %33 : vector<8x128xi32> to vector<8x128xf32>
    %35 = arith.truncf %34 : vector<8x128xf32> to vector<8x128xbf16>
    %36 = arith.extui %32 : vector<8x128xi1> to vector<8x128xi32>
    %37 = arith.sitofp %36 : vector<8x128xi32> to vector<8x128xf32>
    %cst_20 = arith.constant dense<0.000000e+00> : vector<8x128xf32>
    %38 = tpu.matmul %35, %4, %cst_20 {dimension_numbers = #tpu.dot_dimension_numbers<[1], [0], [0], [1], [0, 0, 1, 1], [], []>} : vector<8x128xbf16>, vector<128x128xbf16>, vector<8x128xf32> -> vector<8x128xf32>
    %39 = arith.addf %38, %12 : vector<8x128xf32>
    %cst_21 = arith.constant 0.899999976 : f32
    %40 = vector.broadcast %cst_21 : f32 to vector<8x128xf32>
    %41 = arith.mulf %40, %6 : vector<8x128xf32>
    %42 = arith.addf %41, %39 : vector<8x128xf32>
    %cst_22 = arith.constant 1.000000e+00 : f32
    %43 = vector.broadcast %cst_22 : f32 to vector<8x128xf32>
    %44 = arith.mulf %43, %20 : vector<8x128xf32>
    %45 = arith.subf %42, %44 : vector<8x128xf32>
    %cst_23 = arith.constant 1.000000e+00 : f32
    %46 = vector.broadcast %cst_23 : f32 to vector<8x128xf32>
    %47 = arith.cmpf ogt, %45, %46 : vector<8x128xf32>
    %48 = arith.extui %47 : vector<8x128xi1> to vector<8x128xi32>
    %49 = arith.sitofp %48 : vector<8x128xi32> to vector<8x128xf32>
    %c1 = arith.constant 1 : index
    %c0_24 = arith.constant 0 : index
    %c0_25 = arith.constant 0 : index
    %50 = vector.load %arg2[%c1, %c0_24, %c0_25] : memref<8x8x128xbf16, #tpu.memory_space<vmem>>, vector<1x8x128xbf16>
    %51 = vector.shape_cast %50 : vector<1x8x128xbf16> to vector<8x128xbf16>
    %cst_26 = arith.constant dense<0.000000e+00> : vector<8x128xf32>
    %52 = tpu.matmul %51, %3, %cst_26 {dimension_numbers = #tpu.dot_dimension_numbers<[1], [0], [0], [1], [0, 0, 1, 1], [], []>} : vector<8x128xbf16>, vector<128x128xbf16>, vector<8x128xf32> -> vector<8x128xf32>
    %53 = arith.addf %52, %9 : vector<8x128xf32>
    %cst_27 = arith.constant 0.899999976 : f32
    %54 = vector.broadcast %cst_27 : f32 to vector<8x128xf32>
    %55 = arith.mulf %54, %30 : vector<8x128xf32>
    %56 = arith.addf %55, %53 : vector<8x128xf32>
    %cst_28 = arith.constant 1.000000e+00 : f32
    %57 = vector.broadcast %cst_28 : f32 to vector<8x128xf32>
    %58 = arith.mulf %57, %37 : vector<8x128xf32>
    %59 = arith.subf %56, %58 : vector<8x128xf32>
    %cst_29 = arith.constant 1.000000e+00 : f32
    %60 = vector.broadcast %cst_29 : f32 to vector<8x128xf32>
    %61 = arith.cmpf ogt, %59, %60 : vector<8x128xf32>
    %62 = arith.extui %61 : vector<8x128xi1> to vector<8x128xi32>
    %63 = arith.sitofp %62 : vector<8x128xi32> to vector<8x128xf32>
    %64 = arith.truncf %63 : vector<8x128xf32> to vector<8x128xbf16>
    %65 = arith.extui %61 : vector<8x128xi1> to vector<8x128xi32>
    %66 = arith.sitofp %65 : vector<8x128xi32> to vector<8x128xf32>
    %cst_30 = arith.constant dense<0.000000e+00> : vector<8x128xf32>
    %67 = tpu.matmul %64, %4, %cst_30 {dimension_numbers = #tpu.dot_dimension_numbers<[1], [0], [0], [1], [0, 0, 1, 1], [], []>} : vector<8x128xbf16>, vector<128x128xbf16>, vector<8x128xf32> -> vector<8x128xf32>
    %68 = arith.addf %67, %12 : vector<8x128xf32>
    %cst_31 = arith.constant 0.899999976 : f32
    %69 = vector.broadcast %cst_31 : f32 to vector<8x128xf32>
    %70 = arith.mulf %69, %45 : vector<8x128xf32>
    %71 = arith.addf %70, %68 : vector<8x128xf32>
    %cst_32 = arith.constant 1.000000e+00 : f32
    %72 = vector.broadcast %cst_32 : f32 to vector<8x128xf32>
    %73 = arith.mulf %72, %49 : vector<8x128xf32>
    %74 = arith.subf %71, %73 : vector<8x128xf32>
    %cst_33 = arith.constant 1.000000e+00 : f32
    %75 = vector.broadcast %cst_33 : f32 to vector<8x128xf32>
    %76 = arith.cmpf ogt, %74, %75 : vector<8x128xf32>
    %77 = arith.extui %76 : vector<8x128xi1> to vector<8x128xi32>
    %78 = arith.sitofp %77 : vector<8x128xi32> to vector<8x128xf32>
    %c2 = arith.constant 2 : index
    %c0_34 = arith.constant 0 : index
    %c0_35 = arith.constant 0 : index
    %79 = vector.load %arg2[%c2, %c0_34, %c0_35] : memref<8x8x128xbf16, #tpu.memory_space<vmem>>, vector<1x8x128xbf16>
    %80 = vector.shape_cast %79 : vector<1x8x128xbf16> to vector<8x128xbf16>
    %cst_36 = arith.constant dense<0.000000e+00> : vector<8x128xf32>
    %81 = tpu.matmul %80, %3, %cst_36 {dimension_numbers = #tpu.dot_dimension_numbers<[1], [0], [0], [1], [0, 0, 1, 1], [], []>} : vector<8x128xbf16>, vector<128x128xbf16>, vector<8x128xf32> -> vector<8x128xf32>
    %82 = arith.addf %81, %9 : vector<8x128xf32>
    %cst_37 = arith.constant 0.899999976 : f32
    %83 = vector.broadcast %cst_37 : f32 to vector<8x128xf32>
    %84 = arith.mulf %83, %59 : vector<8x128xf32>
    %85 = arith.addf %84, %82 : vector<8x128xf32>
    %cst_38 = arith.constant 1.000000e+00 : f32
    %86 = vector.broadcast %cst_38 : f32 to vector<8x128xf32>
    %87 = arith.mulf %86, %66 : vector<8x128xf32>
    %88 = arith.subf %85, %87 : vector<8x128xf32>
    %cst_39 = arith.constant 1.000000e+00 : f32
    %89 = vector.broadcast %cst_39 : f32 to vector<8x128xf32>
    %90 = arith.cmpf ogt, %88, %89 : vector<8x128xf32>
    %91 = arith.extui %90 : vector<8x128xi1> to vector<8x128xi32>
    %92 = arith.sitofp %91 : vector<8x128xi32> to vector<8x128xf32>
    %93 = arith.truncf %92 : vector<8x128xf32> to vector<8x128xbf16>
    %94 = arith.extui %90 : vector<8x128xi1> to vector<8x128xi32>
    %95 = arith.sitofp %94 : vector<8x128xi32> to vector<8x128xf32>
    %cst_40 = arith.constant dense<0.000000e+00> : vector<8x128xf32>
    %96 = tpu.matmul %93, %4, %cst_40 {dimension_numbers = #tpu.dot_dimension_numbers<[1], [0], [0], [1], [0, 0, 1, 1], [], []>} : vector<8x128xbf16>, vector<128x128xbf16>, vector<8x128xf32> -> vector<8x128xf32>
    %97 = arith.addf %96, %12 : vector<8x128xf32>
    %cst_41 = arith.constant 0.899999976 : f32
    %98 = vector.broadcast %cst_41 : f32 to vector<8x128xf32>
    %99 = arith.mulf %98, %74 : vector<8x128xf32>
    %100 = arith.addf %99, %97 : vector<8x128xf32>
    %cst_42 = arith.constant 1.000000e+00 : f32
    %101 = vector.broadcast %cst_42 : f32 to vector<8x128xf32>
    %102 = arith.mulf %101, %78 : vector<8x128xf32>
    %103 = arith.subf %100, %102 : vector<8x128xf32>
    %cst_43 = arith.constant 1.000000e+00 : f32
    %104 = vector.broadcast %cst_43 : f32 to vector<8x128xf32>
    %105 = arith.cmpf ogt, %103, %104 : vector<8x128xf32>
    %106 = arith.extui %105 : vector<8x128xi1> to vector<8x128xi32>
    %107 = arith.sitofp %106 : vector<8x128xi32> to vector<8x128xf32>
    %c3 = arith.constant 3 : index
    %c0_44 = arith.constant 0 : index
    %c0_45 = arith.constant 0 : index
    %108 = vector.load %arg2[%c3, %c0_44, %c0_45] : memref<8x8x128xbf16, #tpu.memory_space<vmem>>, vector<1x8x128xbf16>
    %109 = vector.shape_cast %108 : vector<1x8x128xbf16> to vector<8x128xbf16>
    %cst_46 = arith.constant dense<0.000000e+00> : vector<8x128xf32>
    %110 = tpu.matmul %109, %3, %cst_46 {dimension_numbers = #tpu.dot_dimension_numbers<[1], [0], [0], [1], [0, 0, 1, 1], [], []>} : vector<8x128xbf16>, vector<128x128xbf16>, vector<8x128xf32> -> vector<8x128xf32>
    %111 = arith.addf %110, %9 : vector<8x128xf32>
    %cst_47 = arith.constant 0.899999976 : f32
    %112 = vector.broadcast %cst_47 : f32 to vector<8x128xf32>
    %113 = arith.mulf %112, %88 : vector<8x128xf32>
    %114 = arith.addf %113, %111 : vector<8x128xf32>
    %cst_48 = arith.constant 1.000000e+00 : f32
    %115 = vector.broadcast %cst_48 : f32 to vector<8x128xf32>
    %116 = arith.mulf %115, %95 : vector<8x128xf32>
    %117 = arith.subf %114, %116 : vector<8x128xf32>
    %cst_49 = arith.constant 1.000000e+00 : f32
    %118 = vector.broadcast %cst_49 : f32 to vector<8x128xf32>
    %119 = arith.cmpf ogt, %117, %118 : vector<8x128xf32>
    %120 = arith.extui %119 : vector<8x128xi1> to vector<8x128xi32>
    %121 = arith.sitofp %120 : vector<8x128xi32> to vector<8x128xf32>
    %122 = arith.truncf %121 : vector<8x128xf32> to vector<8x128xbf16>
    %123 = arith.extui %119 : vector<8x128xi1> to vector<8x128xi32>
    %124 = arith.sitofp %123 : vector<8x128xi32> to vector<8x128xf32>
    %cst_50 = arith.constant dense<0.000000e+00> : vector<8x128xf32>
    %125 = tpu.matmul %122, %4, %cst_50 {dimension_numbers = #tpu.dot_dimension_numbers<[1], [0], [0], [1], [0, 0, 1, 1], [], []>} : vector<8x128xbf16>, vector<128x128xbf16>, vector<8x128xf32> -> vector<8x128xf32>
    %126 = arith.addf %125, %12 : vector<8x128xf32>
    %cst_51 = arith.constant 0.899999976 : f32
    %127 = vector.broadcast %cst_51 : f32 to vector<8x128xf32>
    %128 = arith.mulf %127, %103 : vector<8x128xf32>
    %129 = arith.addf %128, %126 : vector<8x128xf32>
    %cst_52 = arith.constant 1.000000e+00 : f32
    %130 = vector.broadcast %cst_52 : f32 to vector<8x128xf32>
    %131 = arith.mulf %130, %107 : vector<8x128xf32>
    %132 = arith.subf %129, %131 : vector<8x128xf32>
    %cst_53 = arith.constant 1.000000e+00 : f32
    %133 = vector.broadcast %cst_53 : f32 to vector<8x128xf32>
    %134 = arith.cmpf ogt, %132, %133 : vector<8x128xf32>
    %135 = arith.extui %134 : vector<8x128xi1> to vector<8x128xi32>
    %136 = arith.sitofp %135 : vector<8x128xi32> to vector<8x128xf32>
    %c4 = arith.constant 4 : index
    %c0_54 = arith.constant 0 : index
    %c0_55 = arith.constant 0 : index
    %137 = vector.load %arg2[%c4, %c0_54, %c0_55] : memref<8x8x128xbf16, #tpu.memory_space<vmem>>, vector<1x8x128xbf16>
    %138 = vector.shape_cast %137 : vector<1x8x128xbf16> to vector<8x128xbf16>
    %cst_56 = arith.constant dense<0.000000e+00> : vector<8x128xf32>
    %139 = tpu.matmul %138, %3, %cst_56 {dimension_numbers = #tpu.dot_dimension_numbers<[1], [0], [0], [1], [0, 0, 1, 1], [], []>} : vector<8x128xbf16>, vector<128x128xbf16>, vector<8x128xf32> -> vector<8x128xf32>
    %140 = arith.addf %139, %9 : vector<8x128xf32>
    %cst_57 = arith.constant 0.899999976 : f32
    %141 = vector.broadcast %cst_57 : f32 to vector<8x128xf32>
    %142 = arith.mulf %141, %117 : vector<8x128xf32>
    %143 = arith.addf %142, %140 : vector<8x128xf32>
    %cst_58 = arith.constant 1.000000e+00 : f32
    %144 = vector.broadcast %cst_58 : f32 to vector<8x128xf32>
    %145 = arith.mulf %144, %124 : vector<8x128xf32>
    %146 = arith.subf %143, %145 : vector<8x128xf32>
    %cst_59 = arith.constant 1.000000e+00 : f32
    %147 = vector.broadcast %cst_59 : f32 to vector<8x128xf32>
    %148 = arith.cmpf ogt, %146, %147 : vector<8x128xf32>
    %149 = arith.extui %148 : vector<8x128xi1> to vector<8x128xi32>
    %150 = arith.sitofp %149 : vector<8x128xi32> to vector<8x128xf32>
    %151 = arith.truncf %150 : vector<8x128xf32> to vector<8x128xbf16>
    %152 = arith.extui %148 : vector<8x128xi1> to vector<8x128xi32>
    %153 = arith.sitofp %152 : vector<8x128xi32> to vector<8x128xf32>
    %cst_60 = arith.constant dense<0.000000e+00> : vector<8x128xf32>
    %154 = tpu.matmul %151, %4, %cst_60 {dimension_numbers = #tpu.dot_dimension_numbers<[1], [0], [0], [1], [0, 0, 1, 1], [], []>} : vector<8x128xbf16>, vector<128x128xbf16>, vector<8x128xf32> -> vector<8x128xf32>
    %155 = arith.addf %154, %12 : vector<8x128xf32>
    %cst_61 = arith.constant 0.899999976 : f32
    %156 = vector.broadcast %cst_61 : f32 to vector<8x128xf32>
    %157 = arith.mulf %156, %132 : vector<8x128xf32>
    %158 = arith.addf %157, %155 : vector<8x128xf32>
    %cst_62 = arith.constant 1.000000e+00 : f32
    %159 = vector.broadcast %cst_62 : f32 to vector<8x128xf32>
    %160 = arith.mulf %159, %136 : vector<8x128xf32>
    %161 = arith.subf %158, %160 : vector<8x128xf32>
    %cst_63 = arith.constant 1.000000e+00 : f32
    %162 = vector.broadcast %cst_63 : f32 to vector<8x128xf32>
    %163 = arith.cmpf ogt, %161, %162 : vector<8x128xf32>
    %164 = arith.extui %163 : vector<8x128xi1> to vector<8x128xi32>
    %165 = arith.sitofp %164 : vector<8x128xi32> to vector<8x128xf32>
    %c5 = arith.constant 5 : index
    %c0_64 = arith.constant 0 : index
    %c0_65 = arith.constant 0 : index
    %166 = vector.load %arg2[%c5, %c0_64, %c0_65] : memref<8x8x128xbf16, #tpu.memory_space<vmem>>, vector<1x8x128xbf16>
    %167 = vector.shape_cast %166 : vector<1x8x128xbf16> to vector<8x128xbf16>
    %cst_66 = arith.constant dense<0.000000e+00> : vector<8x128xf32>
    %168 = tpu.matmul %167, %3, %cst_66 {dimension_numbers = #tpu.dot_dimension_numbers<[1], [0], [0], [1], [0, 0, 1, 1], [], []>} : vector<8x128xbf16>, vector<128x128xbf16>, vector<8x128xf32> -> vector<8x128xf32>
    %169 = arith.addf %168, %9 : vector<8x128xf32>
    %cst_67 = arith.constant 0.899999976 : f32
    %170 = vector.broadcast %cst_67 : f32 to vector<8x128xf32>
    %171 = arith.mulf %170, %146 : vector<8x128xf32>
    %172 = arith.addf %171, %169 : vector<8x128xf32>
    %cst_68 = arith.constant 1.000000e+00 : f32
    %173 = vector.broadcast %cst_68 : f32 to vector<8x128xf32>
    %174 = arith.mulf %173, %153 : vector<8x128xf32>
    %175 = arith.subf %172, %174 : vector<8x128xf32>
    %cst_69 = arith.constant 1.000000e+00 : f32
    %176 = vector.broadcast %cst_69 : f32 to vector<8x128xf32>
    %177 = arith.cmpf ogt, %175, %176 : vector<8x128xf32>
    %178 = arith.extui %177 : vector<8x128xi1> to vector<8x128xi32>
    %179 = arith.sitofp %178 : vector<8x128xi32> to vector<8x128xf32>
    %180 = arith.truncf %179 : vector<8x128xf32> to vector<8x128xbf16>
    %181 = arith.extui %177 : vector<8x128xi1> to vector<8x128xi32>
    %182 = arith.sitofp %181 : vector<8x128xi32> to vector<8x128xf32>
    %cst_70 = arith.constant dense<0.000000e+00> : vector<8x128xf32>
    %183 = tpu.matmul %180, %4, %cst_70 {dimension_numbers = #tpu.dot_dimension_numbers<[1], [0], [0], [1], [0, 0, 1, 1], [], []>} : vector<8x128xbf16>, vector<128x128xbf16>, vector<8x128xf32> -> vector<8x128xf32>
    %184 = arith.addf %183, %12 : vector<8x128xf32>
    %cst_71 = arith.constant 0.899999976 : f32
    %185 = vector.broadcast %cst_71 : f32 to vector<8x128xf32>
    %186 = arith.mulf %185, %161 : vector<8x128xf32>
    %187 = arith.addf %186, %184 : vector<8x128xf32>
    %cst_72 = arith.constant 1.000000e+00 : f32
    %188 = vector.broadcast %cst_72 : f32 to vector<8x128xf32>
    %189 = arith.mulf %188, %165 : vector<8x128xf32>
    %190 = arith.subf %187, %189 : vector<8x128xf32>
    %cst_73 = arith.constant 1.000000e+00 : f32
    %191 = vector.broadcast %cst_73 : f32 to vector<8x128xf32>
    %192 = arith.cmpf ogt, %190, %191 : vector<8x128xf32>
    %193 = arith.extui %192 : vector<8x128xi1> to vector<8x128xi32>
    %194 = arith.sitofp %193 : vector<8x128xi32> to vector<8x128xf32>
    %c6 = arith.constant 6 : index
    %c0_74 = arith.constant 0 : index
    %c0_75 = arith.constant 0 : index
    %195 = vector.load %arg2[%c6, %c0_74, %c0_75] : memref<8x8x128xbf16, #tpu.memory_space<vmem>>, vector<1x8x128xbf16>
    %196 = vector.shape_cast %195 : vector<1x8x128xbf16> to vector<8x128xbf16>
    %cst_76 = arith.constant dense<0.000000e+00> : vector<8x128xf32>
    %197 = tpu.matmul %196, %3, %cst_76 {dimension_numbers = #tpu.dot_dimension_numbers<[1], [0], [0], [1], [0, 0, 1, 1], [], []>} : vector<8x128xbf16>, vector<128x128xbf16>, vector<8x128xf32> -> vector<8x128xf32>
    %198 = arith.addf %197, %9 : vector<8x128xf32>
    %cst_77 = arith.constant 0.899999976 : f32
    %199 = vector.broadcast %cst_77 : f32 to vector<8x128xf32>
    %200 = arith.mulf %199, %175 : vector<8x128xf32>
    %201 = arith.addf %200, %198 : vector<8x128xf32>
    %cst_78 = arith.constant 1.000000e+00 : f32
    %202 = vector.broadcast %cst_78 : f32 to vector<8x128xf32>
    %203 = arith.mulf %202, %182 : vector<8x128xf32>
    %204 = arith.subf %201, %203 : vector<8x128xf32>
    %cst_79 = arith.constant 1.000000e+00 : f32
    %205 = vector.broadcast %cst_79 : f32 to vector<8x128xf32>
    %206 = arith.cmpf ogt, %204, %205 : vector<8x128xf32>
    %207 = arith.extui %206 : vector<8x128xi1> to vector<8x128xi32>
    %208 = arith.sitofp %207 : vector<8x128xi32> to vector<8x128xf32>
    %209 = arith.truncf %208 : vector<8x128xf32> to vector<8x128xbf16>
    %210 = arith.extui %206 : vector<8x128xi1> to vector<8x128xi32>
    %211 = arith.sitofp %210 : vector<8x128xi32> to vector<8x128xf32>
    %cst_80 = arith.constant dense<0.000000e+00> : vector<8x128xf32>
    %212 = tpu.matmul %209, %4, %cst_80 {dimension_numbers = #tpu.dot_dimension_numbers<[1], [0], [0], [1], [0, 0, 1, 1], [], []>} : vector<8x128xbf16>, vector<128x128xbf16>, vector<8x128xf32> -> vector<8x128xf32>
    %213 = arith.addf %212, %12 : vector<8x128xf32>
    %cst_81 = arith.constant 0.899999976 : f32
    %214 = vector.broadcast %cst_81 : f32 to vector<8x128xf32>
    %215 = arith.mulf %214, %190 : vector<8x128xf32>
    %216 = arith.addf %215, %213 : vector<8x128xf32>
    %cst_82 = arith.constant 1.000000e+00 : f32
    %217 = vector.broadcast %cst_82 : f32 to vector<8x128xf32>
    %218 = arith.mulf %217, %194 : vector<8x128xf32>
    %219 = arith.subf %216, %218 : vector<8x128xf32>
    %cst_83 = arith.constant 1.000000e+00 : f32
    %220 = vector.broadcast %cst_83 : f32 to vector<8x128xf32>
    %221 = arith.cmpf ogt, %219, %220 : vector<8x128xf32>
    %222 = arith.extui %221 : vector<8x128xi1> to vector<8x128xi32>
    %223 = arith.sitofp %222 : vector<8x128xi32> to vector<8x128xf32>
    %c7 = arith.constant 7 : index
    %c0_84 = arith.constant 0 : index
    %c0_85 = arith.constant 0 : index
    %224 = vector.load %arg2[%c7, %c0_84, %c0_85] : memref<8x8x128xbf16, #tpu.memory_space<vmem>>, vector<1x8x128xbf16>
    %225 = vector.shape_cast %224 : vector<1x8x128xbf16> to vector<8x128xbf16>
    %cst_86 = arith.constant dense<0.000000e+00> : vector<8x128xf32>
    %226 = tpu.matmul %225, %3, %cst_86 {dimension_numbers = #tpu.dot_dimension_numbers<[1], [0], [0], [1], [0, 0, 1, 1], [], []>} : vector<8x128xbf16>, vector<128x128xbf16>, vector<8x128xf32> -> vector<8x128xf32>
    %227 = arith.addf %226, %9 : vector<8x128xf32>
    %cst_87 = arith.constant 0.899999976 : f32
    %228 = vector.broadcast %cst_87 : f32 to vector<8x128xf32>
    %229 = arith.mulf %228, %204 : vector<8x128xf32>
    %230 = arith.addf %229, %227 : vector<8x128xf32>
    %cst_88 = arith.constant 1.000000e+00 : f32
    %231 = vector.broadcast %cst_88 : f32 to vector<8x128xf32>
    %232 = arith.mulf %231, %211 : vector<8x128xf32>
    %233 = arith.subf %230, %232 : vector<8x128xf32>
    %cst_89 = arith.constant 1.000000e+00 : f32
    %234 = vector.broadcast %cst_89 : f32 to vector<8x128xf32>
    %235 = arith.cmpf ogt, %233, %234 : vector<8x128xf32>
    %236 = arith.extui %235 : vector<8x128xi1> to vector<8x128xi32>
    %237 = arith.sitofp %236 : vector<8x128xi32> to vector<8x128xf32>
    %238 = arith.truncf %237 : vector<8x128xf32> to vector<8x128xbf16>
    %cst_90 = arith.constant dense<0.000000e+00> : vector<8x128xf32>
    %239 = tpu.matmul %238, %4, %cst_90 {dimension_numbers = #tpu.dot_dimension_numbers<[1], [0], [0], [1], [0, 0, 1, 1], [], []>} : vector<8x128xbf16>, vector<128x128xbf16>, vector<8x128xf32> -> vector<8x128xf32>
    %240 = arith.addf %239, %12 : vector<8x128xf32>
    %cst_91 = arith.constant 0.899999976 : f32
    %241 = vector.broadcast %cst_91 : f32 to vector<8x128xf32>
    %242 = arith.mulf %241, %219 : vector<8x128xf32>
    %243 = arith.addf %242, %240 : vector<8x128xf32>
    %cst_92 = arith.constant 1.000000e+00 : f32
    %244 = vector.broadcast %cst_92 : f32 to vector<8x128xf32>
    %245 = arith.mulf %244, %223 : vector<8x128xf32>
    %246 = arith.subf %243, %245 : vector<8x128xf32>
    %c0_93 = arith.constant 0 : index
    %c0_94 = arith.constant 0 : index
    %247 = vector.load %arg8[%c0_93, %c0_94] : memref<8x128xf32, #tpu.memory_space<vmem>>, vector<8x128xf32>
    tpu.vector_store %arg8[%c0_93, %c0_94], %233 {strides = array<i32>} : memref<8x128xf32, #tpu.memory_space<vmem>>, vector<8x128xf32>,
    %c0_95 = arith.constant 0 : index
    %c0_96 = arith.constant 0 : index
    %248 = vector.load %arg9[%c0_95, %c0_96] : memref<8x128xf32, #tpu.memory_space<vmem>>, vector<8x128xf32>
    tpu.vector_store %arg9[%c0_95, %c0_96], %246 {strides = array<i32>} : memref<8x128xf32, #tpu.memory_space<vmem>>, vector<8x128xf32>,
    %c0_i32_97 = arith.constant 0 : i32
    %249 = arith.cmpi eq, %arg1, %c0_i32_97 : i32
    %250 = arith.extui %249 : i1 to i32
    %c0_i32_98 = arith.constant 0 : i32
    %251 = arith.cmpi ne, %250, %c0_i32_98 : i32
    scf.if %251 {
      %c0_99 = arith.constant 0 : index
      %c0_100 = arith.constant 0 : index
      %252 = vector.load %arg7[%c0_99, %c0_100] : memref<8x128xf32, #tpu.memory_space<vmem>>, vector<8x128xf32>
      tpu.vector_store %arg7[%c0_99, %c0_100], %246 {strides = array<i32>} : memref<8x128xf32, #tpu.memory_space<vmem>>, vector<8x128xf32>,
    } else {
    }
    return
  }
  func.func @transform_0(%arg0: i32, %arg1: i32) -> (i32, i32, i32) {
    %c0_i32 = arith.constant 0 : i32
    %c0_i32_0 = arith.constant 0 : i32
    return %arg1, %arg0, %c0_i32 : i32, i32, i32
  }
  func.func @transform_1(%arg0: i32, %arg1: i32) -> (i32, i32) {
    %c0_i32 = arith.constant 0 : i32
    %c0_i32_0 = arith.constant 0 : i32
    %c0_i32_1 = arith.constant 0 : i32
    return %c0_i32, %c0_i32_0 : i32, i32
  }
  func.func @transform_2(%arg0: i32, %arg1: i32) -> (i32, i32) {
    %c0_i32 = arith.constant 0 : i32
    %c0_i32_0 = arith.constant 0 : i32
    %c0_i32_1 = arith.constant 0 : i32
    return %c0_i32, %c0_i32_0 : i32, i32
  }
  func.func @transform_3(%arg0: i32, %arg1: i32) -> (i32, i32) {
    %c0_i32 = arith.constant 0 : i32
    %c0_i32_0 = arith.constant 0 : i32
    %c0_i32_1 = arith.constant 0 : i32
    return %c0_i32, %c0_i32_0 : i32, i32
  }
  func.func @transform_4(%arg0: i32, %arg1: i32) -> (i32, i32) {
    %c0_i32 = arith.constant 0 : i32
    %c0_i32_0 = arith.constant 0 : i32
    %c0_i32_1 = arith.constant 0 : i32
    return %c0_i32, %c0_i32_0 : i32, i32
  }
  func.func @transform_5(%arg0: i32, %arg1: i32) -> (i32, i32) {
    %c0_i32 = arith.constant 0 : i32
    %c0_i32_0 = arith.constant 0 : i32
    return %arg0, %c0_i32 : i32, i32
  }
}

</mosaic_0001>

<llo_original>
// kernel: tpu_custom_call.1
$region0: #{tpu_custom_call.1}
  #allocation0 [shape = 'u32[]', space=smem, size = 0x4, offset = 0x4, fixed_abs, tag = 'smem constant byte address 0x4 - core index']
  #allocation1 [shape = 'u32[144,128]{1,0:T(1,128)}', space=vmem, size = 0x12000, scoped, tag = 'internal scratch']
  #allocation2 [shape = 'f32[8,128]{1,0:T(8,128)}', space=vmem, size = 0x1000, scoped, tag = 'scratch operand']
  #allocation3 [shape = 'f32[8,128]{1,0:T(8,128)}', space=vmem, size = 0x1000, scoped, tag = 'scratch operand']
  %s0 = inlined_call_operand.hbm [shape: bf16[8,8,128], index: 0, kind: input, shape index: {}]
  %s1 = inlined_call_operand.hbm [shape: bf16[128,128], index: 1, kind: input, shape index: {}]
  %s2 = inlined_call_operand.vmem [shape: f32[1,128], index: 2, kind: input, shape index: {}]
  %s3 = inlined_call_operand.hbm [shape: bf16[128,128], index: 3, kind: input, shape index: {}]
  %s4 = inlined_call_operand.vmem [shape: f32[1,128], index: 4, kind: input, shape index: {}]
  %s5 = inlined_call_operand.hbm [shape: f32[8,128], index: 5, kind: output, shape index: {}]
  %s6 = sld [smem:[#allocation0]]
  $region50: #{tpu_custom_call.1} parent=0
    _
  %s8 = ssub.s32 1, %s6
  %s9 = scalar_select 0, %s8, %s6
  $region1: #{tpu_custom_call.1} parent=0
    #allocation4 [shape = 'u8[16384]{0}', space=vmem, size = 0x4000, scoped, tag = 'input window, operand 0, single buffered']
    #allocation5 [shape = 's32[1]{0}', space=sflag, size = 0x4, scoped, tag = 'scoped memory for tpu_custom_call.1']
    #allocation6 [shape = 's32[1]{0}', space=sflag, size = 0x4, scoped, tag = 'scoped memory for tpu_custom_call.1']
    #allocation7 [shape = 'u8[32768]{0}', space=vmem, size = 0x8000, scoped, tag = 'input window, operand 1, single buffered']
    #allocation8 [shape = 's32[1]{0}', space=sflag, size = 0x4, scoped, tag = 'scoped memory for tpu_custom_call.1']
    #allocation9 [shape = 'u8[32768]{0}', space=vmem, size = 0x8000, scoped, tag = 'input window, operand 3, single buffered']
    #allocation10 [shape = 'u8[4096]{0}', space=vmem, size = 0x1000, scoped, tag = 'output window, operand 0, single buffered']
    %10 = vsyncpa [#allocation5], 0
    %11 = vsyncpa [#allocation8], 0
    %12 = vsyncpa [#allocation6], 0
    // Predicated region
    $region2: #{tpu_custom_call.1} parent=1 // pred_check
      _
    $region3: #{tpu_custom_call.1} parent=1 // pred_check_branch
      %14 = sbr.rel (0) target = $region5
    $region4: #{tpu_custom_call.1} parent=1 // pred_region
      %s16 = ssub.s32 512, 512
      %17 = vsyncadd [#allocation5], %s16
      %s18 = sshll.u32 [#allocation4], 4
      %s19 = int_to_ptr.vmem [resolvable:$true] %s18
      %24 = dma.hbm_to_vmem [thread:$0]  %s0, 512, %s19, [#allocation5], 64, 64, 4
    $region5: #{tpu_custom_call.1} parent=1 // pred_fallthru
      _
    // Predicated region
    $region6: #{tpu_custom_call.1} parent=1 // pred_check
      _
    $region7: #{tpu_custom_call.1} parent=1 // pred_check_branch
      %26 = sbr.rel (0) target = $region9
    $region8: #{tpu_custom_call.1} parent=1 // pred_region
      %s28 = ssub.s32 1024, 1024
      %29 = vsyncadd [#allocation8], %s28
      %s30 = sshll.u32 [#allocation7], 4
      %s31 = int_to_ptr.vmem [resolvable:$true] %s30
      %36 = dma.hbm_to_vmem [thread:$0]  %s1, 1024, %s31, [#allocation8], 64, 64, 4
    $region9: #{tpu_custom_call.1} parent=1 // pred_fallthru
      _
    // Predicated region
    $region10: #{tpu_custom_call.1} parent=1 // pred_check
      _
    $region11: #{tpu_custom_call.1} parent=1 // pred_check_branch
      %38 = sbr.rel (0) target = $region13
    $region12: #{tpu_custom_call.1} parent=1 // pred_region
      _
    $region13: #{tpu_custom_call.1} parent=1 // pred_fallthru
      _
    // Predicated region
    $region14: #{tpu_custom_call.1} parent=1 // pred_check
      _
    $region15: #{tpu_custom_call.1} parent=1 // pred_check_branch
      %40 = sbr.rel (0) target = $region17
    $region16: #{tpu_custom_call.1} parent=1 // pred_region
      %s42 = ssub.s32 1024, 1024
      %43 = vsyncadd [#allocation8], %s42
      %s44 = sshll.u32 [#allocation9], 4
      %s45 = int_to_ptr.vmem [resolvable:$true] %s44
      %50 = dma.hbm_to_vmem [thread:$0]  %s3, 1024, %s45, [#allocation8], 64, 64, 4
    $region17: #{tpu_custom_call.1} parent=1 // pred_fallthru
      _
    // Predicated region
    $region18: #{tpu_custom_call.1} parent=1 // pred_check
      _
    $region19: #{tpu_custom_call.1} parent=1 // pred_check_branch
      %52 = sbr.rel (0) target = $region21
    $region20: #{tpu_custom_call.1} parent=1 // pred_region
      _
    $region21: #{tpu_custom_call.1} parent=1 // pred_fallthru
      _
    // Predicated region
    $region22: #{tpu_custom_call.1} parent=1 // pred_check
      _
    $region23: #{tpu_custom_call.1} parent=1 // pred_check_branch
      %54 = sbr.rel (0) target = $region25
    $region24: #{tpu_custom_call.1} parent=1 // pred_region
      %55 = dma.done [#allocation5], 512
    $region25: #{tpu_custom_call.1} parent=1 // pred_fallthru
      _
    // Predicated region
    $region26: #{tpu_custom_call.1} parent=1 // pred_check
      _
    $region27: #{tpu_custom_call.1} parent=1 // pred_check_branch
      %57 = sbr.rel (0) target = $region29
    $region28: #{tpu_custom_call.1} parent=1 // pred_region
      %58 = dma.done [#allocation8], 1024
    $region29: #{tpu_custom_call.1} parent=1 // pred_fallthru
      _
    // Predicated region
    $region30: #{tpu_custom_call.1} parent=1 // pred_check
      _
    $region31: #{tpu_custom_call.1} parent=1 // pred_check_branch
      %60 = sbr.rel (0) target = $region33
    $region32: #{tpu_custom_call.1} parent=1 // pred_region
      %61 = dma.done [#allocation8], 1024
    $region33: #{tpu_custom_call.1} parent=1 // pred_fallthru
      _
    %p63 = scmp.eq.s32.totalorder 0, 0
    // Predicated region
    $region34: #{tpu_custom_call.1} parent=1 // pred_check
      %p64 = pneg %p63
    $region35: #{tpu_custom_call.1} parent=1 // pred_check_branch
      %66 = sbr.rel (%p64) target = $region37
    $region36: #{tpu_custom_call.1} parent=1 // pred_region
      %67 = vst [vmem:[#allocation2] sm:$0xff] 0.0
      %68 = vst [vmem:[#allocation3] sm:$0xff] 0.0
    $region37: #{tpu_custom_call.1} parent=1 // pred_fallthru
      _
    %v69 = vld [vmem:[#allocation7] sm:$0xf]
    %v70 = vld [vmem:[#allocation7 + $0x4] sm:$0xf]
    %v71 = vld [vmem:[#allocation7 + $0x8] sm:$0xf]
    %v72 = vld [vmem:[#allocation7 + $0xc] sm:$0xf]
    %v73 = vld [vmem:[#allocation7 + $0x10] sm:$0xf]
    %v74 = vld [vmem:[#allocation7 + $0x14] sm:$0xf]
    %v75 = vld [vmem:[#allocation7 + $0x18] sm:$0xf]
    %v76 = vld [vmem:[#allocation7 + $0x1c] sm:$0xf]
    %v77 = vld [vmem:[#allocation7 + $0x20] sm:$0xf]
    %v78 = vld [vmem:[#allocation7 + $0x24] sm:$0xf]
    %v79 = vld [vmem:[#allocation7 + $0x28] sm:$0xf]
    %v80 = vld [vmem:[#allocation7 + $0x2c] sm:$0xf]
    %v81 = vld [vmem:[#allocation7 + $0x30] sm:$0xf]
    %v82 = vld [vmem:[#allocation7 + $0x34] sm:$0xf]
    %v83 = vld [vmem:[#allocation7 + $0x38] sm:$0xf]
    %v84 = vld [vmem:[#allocation7 + $0x3c] sm:$0xf]
    %v85 = vld [vmem:[#allocation9] sm:$0xf]
    %v86 = vld [vmem:[#allocation9 + $0x4] sm:$0xf]
    %v87 = vld [vmem:[#allocation9 + $0x8] sm:$0xf]
    %v88 = vld [vmem:[#allocation9 + $0xc] sm:$0xf]
    %v89 = vld [vmem:[#allocation9 + $0x10] sm:$0xf]
    %v90 = vld [vmem:[#allocation9 + $0x14] sm:$0xf]
    %v91 = vld [vmem:[#allocation9 + $0x18] sm:$0xf]
    %v92 = vld [vmem:[#allocation9 + $0x1c] sm:$0xf]
    %v93 = vld [vmem:[#allocation9 + $0x20] sm:$0xf]
    %v94 = vld [vmem:[#allocation9 + $0x24] sm:$0xf]
    %v95 = vld [vmem:[#allocation9 + $0x28] sm:$0xf]
    %v96 = vld [vmem:[#allocation9 + $0x2c] sm:$0xf]
    %v97 = vld [vmem:[#allocation9 + $0x30] sm:$0xf]
    %v98 = vld [vmem:[#allocation9 + $0x34] sm:$0xf]
    %v99 = vld [vmem:[#allocation9 + $0x38] sm:$0xf]
    %v100 = vld [vmem:[#allocation9 + $0x3c] sm:$0xf]
    %v101 = vld [vmem:[#allocation2] sm:$0xff]
    %v102 = vld [vmem:[#allocation3] sm:$0xff]
    %v103 = vld [vmem:[%s2] sm:$0x1]
    %v105 = vlaneseq
    %v106 = vshrl.u32 %v105, 7
    %v107 = vsub.s32 0, %v106
    %v108 = vrot.slane %v103, %v107
    %v110 = vld [vmem:[%s4] sm:$0x1]
    %v112 = vlaneseq
    %v113 = vshrl.u32 %v112, 7
    %v114 = vsub.s32 0, %v113
    %v115 = vrot.slane %v110, %v114
    %vm117 = vcmp.gt.f32.partialorder %v101, 1.0
    %v118 = vsel %vm117, 1, 0
    %v119 = vcvt.s32.f32 %v118
    %vm120 = vcmp.gt.f32.partialorder %v102, 1.0
    %v121 = vsel %vm120, 1, 0
    %v122 = vcvt.s32.f32 %v121
    %v123 = vld [vmem:[#allocation4] sm:$0xf]
    %v140 = vunpack.c.l.b16 %v69
    %v141 = vunpack.c.l.b16 %v70
    %v142 = vunpack.c.l.b16 %v71
    %v143 = vunpack.c.l.b16 %v72
    %v144 = vunpack.c.l.b16 %v73
    %v145 = vunpack.c.l.b16 %v74
    %v146 = vunpack.c.l.b16 %v75
    %v147 = vunpack.c.l.b16 %v76
    %v148 = vunpack.c.l.b16 %v77
    %v149 = vunpack.c.l.b16 %v78
    %v150 = vunpack.c.l.b16 %v79
    %v151 = vunpack.c.l.b16 %v80
    %v152 = vunpack.c.l.b16 %v81
    %v153 = vunpack.c.l.b16 %v82
    %v154 = vunpack.c.l.b16 %v83
    %v155 = vunpack.c.l.b16 %v84
    %v156 = vpack.c.b16 %v141, %v140
    %v157 = vpack.c.b16 %v143, %v142
    %v158 = vpack.c.b16 %v145, %v144
    %v159 = vpack.c.b16 %v147, %v146
    %v160 = vpack.c.b16 %v149, %v148
    %v161 = vpack.c.b16 %v151, %v150
    %v162 = vpack.c.b16 %v153, %v152
    %v163 = vpack.c.b16 %v155, %v154
    %172 = vmatprep.subr.bf16.mxu0 0
    %173 = vmatpush1.bf16.msra.mxu0 %v156
    %174 = vmatprep.subr.bf16.mxu0 0
    %175 = vmatpush1.bf16.msra.mxu0 %v157
    %176 = vmatprep.subr.bf16.mxu0 0
    %177 = vmatpush1.bf16.msra.mxu0 %v158
    %178 = vmatprep.subr.bf16.mxu0 0
    %179 = vmatpush1.bf16.msra.mxu0 %v159
    %180 = vmatprep.subr.bf16.mxu0 0
    %181 = vmatpush1.bf16.msra.mxu0 %v160
    %182 = vmatprep.subr.bf16.mxu0 0
    %183 = vmatpush1.bf16.msra.mxu0 %v161
    %184 = vmatprep.subr.bf16.mxu0 0
    %185 = vmatpush1.bf16.msra.mxu0 %v162
    %186 = vmatprep.subr.bf16.mxu0 0
    %187 = vmatpush1.bf16.msra.mxu0 %v163
    %188 = vmatprep.subr.bf16.mxu0 0
    %189 = vmatpush1.bf16.msra.mxu0 0
    %190 = vmatprep.subr.bf16.mxu0 0
    %191 = vmatpush1.bf16.msra.mxu0 0
    %192 = vmatprep.subr.bf16.mxu0 0
    %193 = vmatpush1.bf16.msra.mxu0 0
    %194 = vmatprep.subr.bf16.mxu0 0
    %195 = vmatpush1.bf16.msra.mxu0 0
    %196 = vmatprep.subr.bf16.mxu0 0
    %197 = vmatpush1.bf16.msra.mxu0 0
    %198 = vmatprep.subr.bf16.mxu0 0
    %199 = vmatpush1.bf16.msra.mxu0 0
    %200 = vmatprep.subr.bf16.mxu0 0
    %201 = vmatpush1.bf16.msra.mxu0 0
    %202 = vmatprep.subr.bf16.mxu0 0
    %203 = vmatpush1.bf16.msra.mxu0 0
    %204 = vmatprep.mubr.bf16.mxu0 0
    %205 = vmatmul.mubr.bf16.gmra.mrb[0].mxu0 %v123
    %v206 = vpop.f32.mrb[0].mxu0
    %v207 = vadd.f32 %v108, %v206
    %v208 = vpop.f32.mrb[0].mxu0
    %v209 = vpop.f32.mrb[0].mxu0
    %v210 = vpop.f32.mrb[0].mxu0
    %211 = vdwg.mxu0
    %v212 = vmul.f32 %v101, 0.9
    %v213 = vadd.f32 %v212, %v207
    %v214 = vsub.f32 %v213, %v119
    %vm215 = vcmp.gt.f32.partialorder %v214, 1.0
    %v216 = vsel %vm215, 1, 0
    %v217 = vcvt.s32.f32 %v216
    %v218 = vpack.c.bf16 %v217, %v217
    %v235 = vunpack.c.l.b16 %v85
    %v236 = vunpack.c.l.b16 %v86
    %v237 = vunpack.c.l.b16 %v87
    %v238 = vunpack.c.l.b16 %v88
    %v239 = vunpack.c.l.b16 %v89
    %v240 = vunpack.c.l.b16 %v90
    %v241 = vunpack.c.l.b16 %v91
    %v242 = vunpack.c.l.b16 %v92
    %v243 = vunpack.c.l.b16 %v93
    %v244 = vunpack.c.l.b16 %v94
    %v245 = vunpack.c.l.b16 %v95
    %v246 = vunpack.c.l.b16 %v96
    %v247 = vunpack.c.l.b16 %v97
    %v248 = vunpack.c.l.b16 %v98
    %v249 = vunpack.c.l.b16 %v99
    %v250 = vunpack.c.l.b16 %v100
    %v251 = vpack.c.b16 %v236, %v235
    %v252 = vpack.c.b16 %v238, %v237
    %v253 = vpack.c.b16 %v240, %v239
    %v254 = vpack.c.b16 %v242, %v241
    %v255 = vpack.c.b16 %v244, %v243
    %v256 = vpack.c.b16 %v246, %v245
    %v257 = vpack.c.b16 %v248, %v247
    %v258 = vpack.c.b16 %v250, %v249
    %267 = vmatprep.subr.bf16.mxu0 0
    %268 = vmatpush1.bf16.msra.mxu0 %v251
    %269 = vmatprep.subr.bf16.mxu0 0
    %270 = vmatpush1.bf16.msra.mxu0 %v252
    %271 = vmatprep.subr.bf16.mxu0 0
    %272 = vmatpush1.bf16.msra.mxu0 %v253
    %273 = vmatprep.subr.bf16.mxu0 0
    %274 = vmatpush1.bf16.msra.mxu0 %v254
    %275 = vmatprep.subr.bf16.mxu0 0
    %276 = vmatpush1.bf16.msra.mxu0 %v255
    %277 = vmatprep.subr.bf16.mxu0 0
    %278 = vmatpush1.bf16.msra.mxu0 %v256
    %279 = vmatprep.subr.bf16.mxu0 0
    %280 = vmatpush1.bf16.msra.mxu0 %v257
    %281 = vmatprep.subr.bf16.mxu0 0
    %282 = vmatpush1.bf16.msra.mxu0 %v258
    %283 = vmatprep.subr.bf16.mxu0 0
    %284 = vmatpush1.bf16.msra.mxu0 0
    %285 = vmatprep.subr.bf16.mxu0 0
    %286 = vmatpush1.bf16.msra.mxu0 0
    %287 = vmatprep.subr.bf16.mxu0 0
    %288 = vmatpush1.bf16.msra.mxu0 0
    %289 = vmatprep.subr.bf16.mxu0 0
    %290 = vmatpush1.bf16.msra.mxu0 0
    %291 = vmatprep.subr.bf16.mxu0 0
    %292 = vmatpush1.bf16.msra.mxu0 0
    %293 = vmatprep.subr.bf16.mxu0 0
    %294 = vmatpush1.bf16.msra.mxu0 0
    %295 = vmatprep.subr.bf16.mxu0 0
    %296 = vmatpush1.bf16.msra.mxu0 0
    %297 = vmatprep.subr.bf16.mxu0 0
    %298 = vmatpush1.bf16.msra.mxu0 0
    %299 = vmatprep.mubr.bf16.mxu0 0
    %300 = vmatmul.mubr.bf16.gmra.mrb[0].mxu0 %v218
    %v301 = vpop.f32.mrb[0].mxu0
    %v302 = vadd.f32 %v115, %v301
    %v303 = vpop.f32.mrb[0].mxu0
    %v304 = vpop.f32.mrb[0].mxu0
    %v305 = vpop.f32.mrb[0].mxu0
    %306 = vdwg.mxu0
    %v307 = vmul.f32 %v102, 0.9
    %v308 = vadd.f32 %v307, %v302
    %v309 = vsub.f32 %v308, %v122
    %vm310 = vcmp.gt.f32.partialorder %v309, 1.0
    %v311 = vsel %vm310, 1, 0
    %v312 = vcvt.s32.f32 %v311
    %s313 = scalar_lea.vmem [#allocation4], 4
    %v314 = vld [vmem:[%s313] sm:$0xf]
    %315 = vmatprep.subr.bf16.mxu0 0
    %316 = vmatpush1.bf16.msra.mxu0 %v156
    %317 = vmatprep.subr.bf16.mxu0 0
    %318 = vmatpush1.bf16.msra.mxu0 %v157
    %319 = vmatprep.subr.bf16.mxu0 0
    %320 = vmatpush1.bf16.msra.mxu0 %v158
    %321 = vmatprep.subr.bf16.mxu0 0
    %322 = vmatpush1.bf16.msra.mxu0 %v159
    %323 = vmatprep.subr.bf16.mxu0 0
    %324 = vmatpush1.bf16.msra.mxu0 %v160
    %325 = vmatprep.subr.bf16.mxu0 0
    %326 = vmatpush1.bf16.msra.mxu0 %v161
    %327 = vmatprep.subr.bf16.mxu0 0
    %328 = vmatpush1.bf16.msra.mxu0 %v162
    %329 = vmatprep.subr.bf16.mxu0 0
    %330 = vmatpush1.bf16.msra.mxu0 %v163
    %331 = vmatprep.subr.bf16.mxu0 0
    %332 = vmatpush1.bf16.msra.mxu0 0
    %333 = vmatprep.subr.bf16.mxu0 0
    %334 = vmatpush1.bf16.msra.mxu0 0
    %335 = vmatprep.subr.bf16.mxu0 0
    %336 = vmatpush1.bf16.msra.mxu0 0
    %337 = vmatprep.subr.bf16.mxu0 0
    %338 = vmatpush1.bf16.msra.mxu0 0
    %339 = vmatprep.subr.bf16.mxu0 0
    %340 = vmatpush1.bf16.msra.mxu0 0
    %341 = vmatprep.subr.bf16.mxu0 0
    %342 = vmatpush1.bf16.msra.mxu0 0
    %343 = vmatprep.subr.bf16.mxu0 0
    %344 = vmatpush1.bf16.msra.mxu0 0
    %345 = vmatprep.subr.bf16.mxu0 0
    %346 = vmatpush1.bf16.msra.mxu0 0
    %347 = vmatprep.mubr.bf16.mxu0 0
    %348 = vmatmul.mubr.bf16.gmra.mrb[0].mxu0 %v314
    %v349 = vpop.f32.mrb[0].mxu0
    %v350 = vadd.f32 %v108, %v349
    %v351 = vpop.f32.mrb[0].mxu0
    %v352 = vpop.f32.mrb[0].mxu0
    %v353 = vpop.f32.mrb[0].mxu0
    %354 = vdwg.mxu0
    %v355 = vmul.f32 %v214, 0.9
    %v356 = vadd.f32 %v355, %v350
    %v357 = vsub.f32 %v356, %v217
    %vm358 = vcmp.gt.f32.partialorder %v357, 1.0
    %v359 = vsel %vm358, 1, 0
    %v360 = vcvt.s32.f32 %v359
    %v361 = vpack.c.bf16 %v360, %v360
    %362 = vmatprep.subr.bf16.mxu0 0
    %363 = vmatpush1.bf16.msra.mxu0 %v251
    %364 = vmatprep.subr.bf16.mxu0 0
    %365 = vmatpush1.bf16.msra.mxu0 %v252
    %366 = vmatprep.subr.bf16.mxu0 0
    %367 = vmatpush1.bf16.msra.mxu0 %v253
    %368 = vmatprep.subr.bf16.mxu0 0
    %369 = vmatpush1.bf16.msra.mxu0 %v254
    %370 = vmatprep.subr.bf16.mxu0 0
    %371 = vmatpush1.bf16.msra.mxu0 %v255
    %372 = vmatprep.subr.bf16.mxu0 0
    %373 = vmatpush1.bf16.msra.mxu0 %v256
    %374 = vmatprep.subr.bf16.mxu0 0
    %375 = vmatpush1.bf16.msra.mxu0 %v257
    %376 = vmatprep.subr.bf16.mxu0 0
    %377 = vmatpush1.bf16.msra.mxu0 %v258
    %378 = vmatprep.subr.bf16.mxu0 0
    %379 = vmatpush1.bf16.msra.mxu0 0
    %380 = vmatprep.subr.bf16.mxu0 0
    %381 = vmatpush1.bf16.msra.mxu0 0
    %382 = vmatprep.subr.bf16.mxu0 0
    %383 = vmatpush1.bf16.msra.mxu0 0
    %384 = vmatprep.subr.bf16.mxu0 0
    %385 = vmatpush1.bf16.msra.mxu0 0
    %386 = vmatprep.subr.bf16.mxu0 0
    %387 = vmatpush1.bf16.msra.mxu0 0
    %388 = vmatprep.subr.bf16.mxu0 0
    %389 = vmatpush1.bf16.msra.mxu0 0
    %390 = vmatprep.subr.bf16.mxu0 0
    %391 = vmatpush1.bf16.msra.mxu0 0
    %392 = vmatprep.subr.bf16.mxu0 0
    %393 = vmatpush1.bf16.msra.mxu0 0
    %394 = vmatprep.mubr.bf16.mxu0 0
    %395 = vmatmul.mubr.bf16.gmra.mrb[0].mxu0 %v361
    %v396 = vpop.f32.mrb[0].mxu0
    %v397 = vadd.f32 %v115, %v396
    %v398 = vpop.f32.mrb[0].mxu0
    %v399 = vpop.f32.mrb[0].mxu0
    %v400 = vpop.f32.mrb[0].mxu0
    %401 = vdwg.mxu0
    %v402 = vmul.f32 %v309, 0.9
    %v403 = vadd.f32 %v402, %v397
    %v404 = vsub.f32 %v403, %v312
    %vm405 = vcmp.gt.f32.partialorder %v404, 1.0
    %v406 = vsel %vm405, 1, 0
    %v407 = vcvt.s32.f32 %v406
    %s408 = scalar_lea.vmem [#allocation4], 8
    %v409 = vld [vmem:[%s408] sm:$0xf]
    %410 = vmatprep.subr.bf16.mxu0 0
    %411 = vmatpush1.bf16.msra.mxu0 %v156
    %412 = vmatprep.subr.bf16.mxu0 0
    %413 = vmatpush1.bf16.msra.mxu0 %v157
    %414 = vmatprep.subr.bf16.mxu0 0
    %415 = vmatpush1.bf16.msra.mxu0 %v158
    %416 = vmatprep.subr.bf16.mxu0 0
    %417 = vmatpush1.bf16.msra.mxu0 %v159
    %418 = vmatprep.subr.bf16.mxu0 0
    %419 = vmatpush1.bf16.msra.mxu0 %v160
    %420 = vmatprep.subr.bf16.mxu0 0
    %421 = vmatpush1.bf16.msra.mxu0 %v161
    %422 = vmatprep.subr.bf16.mxu0 0
    %423 = vmatpush1.bf16.msra.mxu0 %v162
    %424 = vmatprep.subr.bf16.mxu0 0
    %425 = vmatpush1.bf16.msra.mxu0 %v163
    %426 = vmatprep.subr.bf16.mxu0 0
    %427 = vmatpush1.bf16.msra.mxu0 0
    %428 = vmatprep.subr.bf16.mxu0 0
    %429 = vmatpush1.bf16.msra.mxu0 0
    %430 = vmatprep.subr.bf16.mxu0 0
    %431 = vmatpush1.bf16.msra.mxu0 0
    %432 = vmatprep.subr.bf16.mxu0 0
    %433 = vmatpush1.bf16.msra.mxu0 0
    %434 = vmatprep.subr.bf16.mxu0 0
    %435 = vmatpush1.bf16.msra.mxu0 0
    %436 = vmatprep.subr.bf16.mxu0 0
    %437 = vmatpush1.bf16.msra.mxu0 0
    %438 = vmatprep.subr.bf16.mxu0 0
    %439 = vmatpush1.bf16.msra.mxu0 0
    %440 = vmatprep.subr.bf16.mxu0 0
    %441 = vmatpush1.bf16.msra.mxu0 0
    %442 = vmatprep.mubr.bf16.mxu0 0
    %443 = vmatmul.mubr.bf16.gmra.mrb[0].mxu0 %v409
    %v444 = vpop.f32.mrb[0].mxu0
    %v445 = vadd.f32 %v108, %v444
    %v446 = vpop.f32.mrb[0].mxu0
    %v447 = vpop.f32.mrb[0].mxu0
    %v448 = vpop.f32.mrb[0].mxu0
    %449 = vdwg.mxu0
    %v450 = vmul.f32 %v357, 0.9
    %v451 = vadd.f32 %v450, %v445
    %v452 = vsub.f32 %v451, %v360
    %vm453 = vcmp.gt.f32.partialorder %v452, 1.0
    %v454 = vsel %vm453, 1, 0
    %v455 = vcvt.s32.f32 %v454
    %v456 = vpack.c.bf16 %v455, %v455
    %457 = vmatprep.subr.bf16.mxu0 0
    %458 = vmatpush1.bf16.msra.mxu0 %v251
    %459 = vmatprep.subr.bf16.mxu0 0
    %460 = vmatpush1.bf16.msra.mxu0 %v252
    %461 = vmatprep.subr.bf16.mxu0 0
    %462 = vmatpush1.bf16.msra.mxu0 %v253
    %463 = vmatprep.subr.bf16.mxu0 0
    %464 = vmatpush1.bf16.msra.mxu0 %v254
    %465 = vmatprep.subr.bf16.mxu0 0
    %466 = vmatpush1.bf16.msra.mxu0 %v255
    %467 = vmatprep.subr.bf16.mxu0 0
    %468 = vmatpush1.bf16.msra.mxu0 %v256
    %469 = vmatprep.subr.bf16.mxu0 0
    %470 = vmatpush1.bf16.msra.mxu0 %v257
    %471 = vmatprep.subr.bf16.mxu0 0
    %472 = vmatpush1.bf16.msra.mxu0 %v258
    %473 = vmatprep.subr.bf16.mxu0 0
    %474 = vmatpush1.bf16.msra.mxu0 0
    %475 = vmatprep.subr.bf16.mxu0 0
    %476 = vmatpush1.bf16.msra.mxu0 0
    %477 = vmatprep.subr.bf16.mxu0 0
    %478 = vmatpush1.bf16.msra.mxu0 0
    %479 = vmatprep.subr.bf16.mxu0 0
    %480 = vmatpush1.bf16.msra.mxu0 0
    %481 = vmatprep.subr.bf16.mxu0 0
    %482 = vmatpush1.bf16.msra.mxu0 0
    %483 = vmatprep.subr.bf16.mxu0 0
    %484 = vmatpush1.bf16.msra.mxu0 0
    %485 = vmatprep.subr.bf16.mxu0 0
    %486 = vmatpush1.bf16.msra.mxu0 0
    %487 = vmatprep.subr.bf16.mxu0 0
    %488 = vmatpush1.bf16.msra.mxu0 0
    %489 = vmatprep.mubr.bf16.mxu0 0
    %490 = vmatmul.mubr.bf16.gmra.mrb[0].mxu0 %v456
    %v491 = vpop.f32.mrb[0].mxu0
    %v492 = vadd.f32 %v115, %v491
    %v493 = vpop.f32.mrb[0].mxu0
    %v494 = vpop.f32.mrb[0].mxu0
    %v495 = vpop.f32.mrb[0].mxu0
    %496 = vdwg.mxu0
    %v497 = vmul.f32 %v404, 0.9
    %v498 = vadd.f32 %v497, %v492
    %v499 = vsub.f32 %v498, %v407
    %vm500 = vcmp.gt.f32.partialorder %v499, 1.0
    %v501 = vsel %vm500, 1, 0
    %v502 = vcvt.s32.f32 %v501
    %s503 = scalar_lea.vmem [#allocation4], 12
    %v504 = vld [vmem:[%s503] sm:$0xf]
    %505 = vmatprep.subr.bf16.mxu0 0
    %506 = vmatpush1.bf16.msra.mxu0 %v156
    %507 = vmatprep.subr.bf16.mxu0 0
    %508 = vmatpush1.bf16.msra.mxu0 %v157
    %509 = vmatprep.subr.bf16.mxu0 0
    %510 = vmatpush1.bf16.msra.mxu0 %v158
    %511 = vmatprep.subr.bf16.mxu0 0
    %512 = vmatpush1.bf16.msra.mxu0 %v159
    %513 = vmatprep.subr.bf16.mxu0 0
    %514 = vmatpush1.bf16.msra.mxu0 %v160
    %515 = vmatprep.subr.bf16.mxu0 0
    %516 = vmatpush1.bf16.msra.mxu0 %v161
    %517 = vmatprep.subr.bf16.mxu0 0
    %518 = vmatpush1.bf16.msra.mxu0 %v162
    %519 = vmatprep.subr.bf16.mxu0 0
    %520 = vmatpush1.bf16.msra.mxu0 %v163
    %521 = vmatprep.subr.bf16.mxu0 0
    %522 = vmatpush1.bf16.msra.mxu0 0
    %523 = vmatprep.subr.bf16.mxu0 0
    %524 = vmatpush1.bf16.msra.mxu0 0
    %525 = vmatprep.subr.bf16.mxu0 0
    %526 = vmatpush1.bf16.msra.mxu0 0
    %527 = vmatprep.subr.bf16.mxu0 0
    %528 = vmatpush1.bf16.msra.mxu0 0
    %529 = vmatprep.subr.bf16.mxu0 0
    %530 = vmatpush1.bf16.msra.mxu0 0
    %531 = vmatprep.subr.bf16.mxu0 0
    %532 = vmatpush1.bf16.msra.mxu0 0
    %533 = vmatprep.subr.bf16.mxu0 0
    %534 = vmatpush1.bf16.msra.mxu0 0
    %535 = vmatprep.subr.bf16.mxu0 0
    %536 = vmatpush1.bf16.msra.mxu0 0
    %537 = vmatprep.mubr.bf16.mxu0 0
    %538 = vmatmul.mubr.bf16.gmra.mrb[0].mxu0 %v504
    %v539 = vpop.f32.mrb[0].mxu0
    %v540 = vadd.f32 %v108, %v539
    %v541 = vpop.f32.mrb[0].mxu0
    %v542 = vpop.f32.mrb[0].mxu0
    %v543 = vpop.f32.mrb[0].mxu0
    %544 = vdwg.mxu0
    %v545 = vmul.f32 %v452, 0.9
    %v546 = vadd.f32 %v545, %v540
    %v547 = vsub.f32 %v546, %v455
    %vm548 = vcmp.gt.f32.partialorder %v547, 1.0
    %v549 = vsel %vm548, 1, 0
    %v550 = vcvt.s32.f32 %v549
    %v551 = vpack.c.bf16 %v550, %v550
    %552 = vmatprep.subr.bf16.mxu0 0
    %553 = vmatpush1.bf16.msra.mxu0 %v251
    %554 = vmatprep.subr.bf16.mxu0 0
    %555 = vmatpush1.bf16.msra.mxu0 %v252
    %556 = vmatprep.subr.bf16.mxu0 0
    %557 = vmatpush1.bf16.msra.mxu0 %v253
    %558 = vmatprep.subr.bf16.mxu0 0
    %559 = vmatpush1.bf16.msra.mxu0 %v254
    %560 = vmatprep.subr.bf16.mxu0 0
    %561 = vmatpush1.bf16.msra.mxu0 %v255
    %562 = vmatprep.subr.bf16.mxu0 0
    %563 = vmatpush1.bf16.msra.mxu0 %v256
    %564 = vmatprep.subr.bf16.mxu0 0
    %565 = vmatpush1.bf16.msra.mxu0 %v257
    %566 = vmatprep.subr.bf16.mxu0 0
    %567 = vmatpush1.bf16.msra.mxu0 %v258
    %568 = vmatprep.subr.bf16.mxu0 0
    %569 = vmatpush1.bf16.msra.mxu0 0
    %570 = vmatprep.subr.bf16.mxu0 0
    %571 = vmatpush1.bf16.msra.mxu0 0
    %572 = vmatprep.subr.bf16.mxu0 0
    %573 = vmatpush1.bf16.msra.mxu0 0
    %574 = vmatprep.subr.bf16.mxu0 0
    %575 = vmatpush1.bf16.msra.mxu0 0
    %576 = vmatprep.subr.bf16.mxu0 0
    %577 = vmatpush1.bf16.msra.mxu0 0
    %578 = vmatprep.subr.bf16.mxu0 0
    %579 = vmatpush1.bf16.msra.mxu0 0
    %580 = vmatprep.subr.bf16.mxu0 0
    %581 = vmatpush1.bf16.msra.mxu0 0
    %582 = vmatprep.subr.bf16.mxu0 0
    %583 = vmatpush1.bf16.msra.mxu0 0
    %584 = vmatprep.mubr.bf16.mxu0 0
    %585 = vmatmul.mubr.bf16.gmra.mrb[0].mxu0 %v551
    %v586 = vpop.f32.mrb[0].mxu0
    %v587 = vadd.f32 %v115, %v586
    %v588 = vpop.f32.mrb[0].mxu0
    %v589 = vpop.f32.mrb[0].mxu0
    %v590 = vpop.f32.mrb[0].mxu0
    %591 = vdwg.mxu0
    %v592 = vmul.f32 %v499, 0.9
    %v593 = vadd.f32 %v592, %v587
    %v594 = vsub.f32 %v593, %v502
    %vm595 = vcmp.gt.f32.partialorder %v594, 1.0
    %v596 = vsel %vm595, 1, 0
    %v597 = vcvt.s32.f32 %v596
    %s598 = scalar_lea.vmem [#allocation4], 16
    %v599 = vld [vmem:[%s598] sm:$0xf]
    %600 = vmatprep.subr.bf16.mxu0 0
    %601 = vmatpush1.bf16.msra.mxu0 %v156
    %602 = vmatprep.subr.bf16.mxu0 0
    %603 = vmatpush1.bf16.msra.mxu0 %v157
    %604 = vmatprep.subr.bf16.mxu0 0
    %605 = vmatpush1.bf16.msra.mxu0 %v158
    %606 = vmatprep.subr.bf16.mxu0 0
    %607 = vmatpush1.bf16.msra.mxu0 %v159
    %608 = vmatprep.subr.bf16.mxu0 0
    %609 = vmatpush1.bf16.msra.mxu0 %v160
    %610 = vmatprep.subr.bf16.mxu0 0
    %611 = vmatpush1.bf16.msra.mxu0 %v161
    %612 = vmatprep.subr.bf16.mxu0 0
    %613 = vmatpush1.bf16.msra.mxu0 %v162
    %614 = vmatprep.subr.bf16.mxu0 0
    %615 = vmatpush1.bf16.msra.mxu0 %v163
    %616 = vmatprep.subr.bf16.mxu0 0
    %617 = vmatpush1.bf16.msra.mxu0 0
    %618 = vmatprep.subr.bf16.mxu0 0
    %619 = vmatpush1.bf16.msra.mxu0 0
    %620 = vmatprep.subr.bf16.mxu0 0
    %621 = vmatpush1.bf16.msra.mxu0 0
    %622 = vmatprep.subr.bf16.mxu0 0
    %623 = vmatpush1.bf16.msra.mxu0 0
    %624 = vmatprep.subr.bf16.mxu0 0
    %625 = vmatpush1.bf16.msra.mxu0 0
    %626 = vmatprep.subr.bf16.mxu0 0
    %627 = vmatpush1.bf16.msra.mxu0 0
    %628 = vmatprep.subr.bf16.mxu0 0
    %629 = vmatpush1.bf16.msra.mxu0 0
    %630 = vmatprep.subr.bf16.mxu0 0
    %631 = vmatpush1.bf16.msra.mxu0 0
    %632 = vmatprep.mubr.bf16.mxu0 0
    %633 = vmatmul.mubr.bf16.gmra.mrb[0].mxu0 %v599
    %v634 = vpop.f32.mrb[0].mxu0
    %v635 = vadd.f32 %v108, %v634
    %v636 = vpop.f32.mrb[0].mxu0
    %v637 = vpop.f32.mrb[0].mxu0
    %v638 = vpop.f32.mrb[0].mxu0
    %639 = vdwg.mxu0
    %v640 = vmul.f32 %v547, 0.9
    %v641 = vadd.f32 %v640, %v635
    %v642 = vsub.f32 %v641, %v550
    %vm643 = vcmp.gt.f32.partialorder %v642, 1.0
    %v644 = vsel %vm643, 1, 0
    %v645 = vcvt.s32.f32 %v644
    %v646 = vpack.c.bf16 %v645, %v645
    %647 = vmatprep.subr.bf16.mxu0 0
    %648 = vmatpush1.bf16.msra.mxu0 %v251
    %649 = vmatprep.subr.bf16.mxu0 0
    %650 = vmatpush1.bf16.msra.mxu0 %v252
    %651 = vmatprep.subr.bf16.mxu0 0
    %652 = vmatpush1.bf16.msra.mxu0 %v253
    %653 = vmatprep.subr.bf16.mxu0 0
    %654 = vmatpush1.bf16.msra.mxu0 %v254
    %655 = vmatprep.subr.bf16.mxu0 0
    %656 = vmatpush1.bf16.msra.mxu0 %v255
    %657 = vmatprep.subr.bf16.mxu0 0
    %658 = vmatpush1.bf16.msra.mxu0 %v256
    %659 = vmatprep.subr.bf16.mxu0 0
    %660 = vmatpush1.bf16.msra.mxu0 %v257
    %661 = vmatprep.subr.bf16.mxu0 0
    %662 = vmatpush1.bf16.msra.mxu0 %v258
    %663 = vmatprep.subr.bf16.mxu0 0
    %664 = vmatpush1.bf16.msra.mxu0 0
    %665 = vmatprep.subr.bf16.mxu0 0
    %666 = vmatpush1.bf16.msra.mxu0 0
    %667 = vmatprep.subr.bf16.mxu0 0
    %668 = vmatpush1.bf16.msra.mxu0 0
    %669 = vmatprep.subr.bf16.mxu0 0
    %670 = vmatpush1.bf16.msra.mxu0 0
    %671 = vmatprep.subr.bf16.mxu0 0
    %672 = vmatpush1.bf16.msra.mxu0 0
    %673 = vmatprep.subr.bf16.mxu0 0
    %674 = vmatpush1.bf16.msra.mxu0 0
    %675 = vmatprep.subr.bf16.mxu0 0
    %676 = vmatpush1.bf16.msra.mxu0 0
    %677 = vmatprep.subr.bf16.mxu0 0
    %678 = vmatpush1.bf16.msra.mxu0 0
    %679 = vmatprep.mubr.bf16.mxu0 0
    %680 = vmatmul.mubr.bf16.gmra.mrb[0].mxu0 %v646
    %v681 = vpop.f32.mrb[0].mxu0
    %v682 = vadd.f32 %v115, %v681
    %v683 = vpop.f32.mrb[0].mxu0
    %v684 = vpop.f32.mrb[0].mxu0
    %v685 = vpop.f32.mrb[0].mxu0
    %686 = vdwg.mxu0
    %v687 = vmul.f32 %v594, 0.9
    %v688 = vadd.f32 %v687, %v682
    %v689 = vsub.f32 %v688, %v597
    %vm690 = vcmp.gt.f32.partialorder %v689, 1.0
    %v691 = vsel %vm690, 1, 0
    %v692 = vcvt.s32.f32 %v691
    %s693 = scalar_lea.vmem [#allocation4], 20
    %v694 = vld [vmem:[%s693] sm:$0xf]
    %695 = vmatprep.subr.bf16.mxu0 0
    %696 = vmatpush1.bf16.msra.mxu0 %v156
    %697 = vmatprep.subr.bf16.mxu0 0
    %698 = vmatpush1.bf16.msra.mxu0 %v157
    %699 = vmatprep.subr.bf16.mxu0 0
    %700 = vmatpush1.bf16.msra.mxu0 %v158
    %701 = vmatprep.subr.bf16.mxu0 0
    %702 = vmatpush1.bf16.msra.mxu0 %v159
    %703 = vmatprep.subr.bf16.mxu0 0
    %704 = vmatpush1.bf16.msra.mxu0 %v160
    %705 = vmatprep.subr.bf16.mxu0 0
    %706 = vmatpush1.bf16.msra.mxu0 %v161
    %707 = vmatprep.subr.bf16.mxu0 0
    %708 = vmatpush1.bf16.msra.mxu0 %v162
    %709 = vmatprep.subr.bf16.mxu0 0
    %710 = vmatpush1.bf16.msra.mxu0 %v163
    %711 = vmatprep.subr.bf16.mxu0 0
    %712 = vmatpush1.bf16.msra.mxu0 0
    %713 = vmatprep.subr.bf16.mxu0 0
    %714 = vmatpush1.bf16.msra.mxu0 0
    %715 = vmatprep.subr.bf16.mxu0 0
    %716 = vmatpush1.bf16.msra.mxu0 0
    %717 = vmatprep.subr.bf16.mxu0 0
    %718 = vmatpush1.bf16.msra.mxu0 0
    %719 = vmatprep.subr.bf16.mxu0 0
    %720 = vmatpush1.bf16.msra.mxu0 0
    %721 = vmatprep.subr.bf16.mxu0 0
    %722 = vmatpush1.bf16.msra.mxu0 0
    %723 = vmatprep.subr.bf16.mxu0 0
    %724 = vmatpush1.bf16.msra.mxu0 0
    %725 = vmatprep.subr.bf16.mxu0 0
    %726 = vmatpush1.bf16.msra.mxu0 0
    %727 = vmatprep.mubr.bf16.mxu0 0
    %728 = vmatmul.mubr.bf16.gmra.mrb[0].mxu0 %v694
    %v729 = vpop.f32.mrb[0].mxu0
    %v730 = vadd.f32 %v108, %v729
    %v731 = vpop.f32.mrb[0].mxu0
    %v732 = vpop.f32.mrb[0].mxu0
    %v733 = vpop.f32.mrb[0].mxu0
    %734 = vdwg.mxu0
    %v735 = vmul.f32 %v642, 0.9
    %v736 = vadd.f32 %v735, %v730
    %v737 = vsub.f32 %v736, %v645
    %vm738 = vcmp.gt.f32.partialorder %v737, 1.0
    %v739 = vsel %vm738, 1, 0
    %v740 = vcvt.s32.f32 %v739
    %v741 = vpack.c.bf16 %v740, %v740
    %742 = vmatprep.subr.bf16.mxu0 0
    %743 = vmatpush1.bf16.msra.mxu0 %v251
    %744 = vmatprep.subr.bf16.mxu0 0
    %745 = vmatpush1.bf16.msra.mxu0 %v252
    %746 = vmatprep.subr.bf16.mxu0 0
    %747 = vmatpush1.bf16.msra.mxu0 %v253
    %748 = vmatprep.subr.bf16.mxu0 0
    %749 = vmatpush1.bf16.msra.mxu0 %v254
    %750 = vmatprep.subr.bf16.mxu0 0
    %751 = vmatpush1.bf16.msra.mxu0 %v255
    %752 = vmatprep.subr.bf16.mxu0 0
    %753 = vmatpush1.bf16.msra.mxu0 %v256
    %754 = vmatprep.subr.bf16.mxu0 0
    %755 = vmatpush1.bf16.msra.mxu0 %v257
    %756 = vmatprep.subr.bf16.mxu0 0
    %757 = vmatpush1.bf16.msra.mxu0 %v258
    %758 = vmatprep.subr.bf16.mxu0 0
    %759 = vmatpush1.bf16.msra.mxu0 0
    %760 = vmatprep.subr.bf16.mxu0 0
    %761 = vmatpush1.bf16.msra.mxu0 0
    %762 = vmatprep.subr.bf16.mxu0 0
    %763 = vmatpush1.bf16.msra.mxu0 0
    %764 = vmatprep.subr.bf16.mxu0 0
    %765 = vmatpush1.bf16.msra.mxu0 0
    %766 = vmatprep.subr.bf16.mxu0 0
    %767 = vmatpush1.bf16.msra.mxu0 0
    %768 = vmatprep.subr.bf16.mxu0 0
    %769 = vmatpush1.bf16.msra.mxu0 0
    %770 = vmatprep.subr.bf16.mxu0 0
    %771 = vmatpush1.bf16.msra.mxu0 0
    %772 = vmatprep.subr.bf16.mxu0 0
    %773 = vmatpush1.bf16.msra.mxu0 0
    %774 = vmatprep.mubr.bf16.mxu0 0
    %775 = vmatmul.mubr.bf16.gmra.mrb[0].mxu0 %v741
    %v776 = vpop.f32.mrb[0].mxu0
    %v777 = vadd.f32 %v115, %v776
    %v778 = vpop.f32.mrb[0].mxu0
    %v779 = vpop.f32.mrb[0].mxu0
    %v780 = vpop.f32.mrb[0].mxu0
    %781 = vdwg.mxu0
    %v782 = vmul.f32 %v689, 0.9
    %v783 = vadd.f32 %v782, %v777
    %v784 = vsub.f32 %v783, %v692
    %vm785 = vcmp.gt.f32.partialorder %v784, 1.0
    %v786 = vsel %vm785, 1, 0
    %v787 = vcvt.s32.f32 %v786
    %s788 = scalar_lea.vmem [#allocation4], 24
    %v789 = vld [vmem:[%s788] sm:$0xf]
    %790 = vmatprep.subr.bf16.mxu0 0
    %791 = vmatpush1.bf16.msra.mxu0 %v156
    %792 = vmatprep.subr.bf16.mxu0 0
    %793 = vmatpush1.bf16.msra.mxu0 %v157
    %794 = vmatprep.subr.bf16.mxu0 0
    %795 = vmatpush1.bf16.msra.mxu0 %v158
    %796 = vmatprep.subr.bf16.mxu0 0
    %797 = vmatpush1.bf16.msra.mxu0 %v159
    %798 = vmatprep.subr.bf16.mxu0 0
    %799 = vmatpush1.bf16.msra.mxu0 %v160
    %800 = vmatprep.subr.bf16.mxu0 0
    %801 = vmatpush1.bf16.msra.mxu0 %v161
    %802 = vmatprep.subr.bf16.mxu0 0
    %803 = vmatpush1.bf16.msra.mxu0 %v162
    %804 = vmatprep.subr.bf16.mxu0 0
    %805 = vmatpush1.bf16.msra.mxu0 %v163
    %806 = vmatprep.subr.bf16.mxu0 0
    %807 = vmatpush1.bf16.msra.mxu0 0
    %808 = vmatprep.subr.bf16.mxu0 0
    %809 = vmatpush1.bf16.msra.mxu0 0
    %810 = vmatprep.subr.bf16.mxu0 0
    %811 = vmatpush1.bf16.msra.mxu0 0
    %812 = vmatprep.subr.bf16.mxu0 0
    %813 = vmatpush1.bf16.msra.mxu0 0
    %814 = vmatprep.subr.bf16.mxu0 0
    %815 = vmatpush1.bf16.msra.mxu0 0
    %816 = vmatprep.subr.bf16.mxu0 0
    %817 = vmatpush1.bf16.msra.mxu0 0
    %818 = vmatprep.subr.bf16.mxu0 0
    %819 = vmatpush1.bf16.msra.mxu0 0
    %820 = vmatprep.subr.bf16.mxu0 0
    %821 = vmatpush1.bf16.msra.mxu0 0
    %822 = vmatprep.mubr.bf16.mxu0 0
    %823 = vmatmul.mubr.bf16.gmra.mrb[0].mxu0 %v789
    %v824 = vpop.f32.mrb[0].mxu0
    %v825 = vadd.f32 %v108, %v824
    %v826 = vpop.f32.mrb[0].mxu0
    %v827 = vpop.f32.mrb[0].mxu0
    %v828 = vpop.f32.mrb[0].mxu0
    %829 = vdwg.mxu0
    %v830 = vmul.f32 %v737, 0.9
    %v831 = vadd.f32 %v830, %v825
    %v832 = vsub.f32 %v831, %v740
    %vm833 = vcmp.gt.f32.partialorder %v832, 1.0
    %v834 = vsel %vm833, 1, 0
    %v835 = vcvt.s32.f32 %v834
    %v836 = vpack.c.bf16 %v835, %v835
    %837 = vmatprep.subr.bf16.mxu0 0
    %838 = vmatpush1.bf16.msra.mxu0 %v251
    %839 = vmatprep.subr.bf16.mxu0 0
    %840 = vmatpush1.bf16.msra.mxu0 %v252
    %841 = vmatprep.subr.bf16.mxu0 0
    %842 = vmatpush1.bf16.msra.mxu0 %v253
    %843 = vmatprep.subr.bf16.mxu0 0
    %844 = vmatpush1.bf16.msra.mxu0 %v254
    %845 = vmatprep.subr.bf16.mxu0 0
    %846 = vmatpush1.bf16.msra.mxu0 %v255
    %847 = vmatprep.subr.bf16.mxu0 0
    %848 = vmatpush1.bf16.msra.mxu0 %v256
    %849 = vmatprep.subr.bf16.mxu0 0
    %850 = vmatpush1.bf16.msra.mxu0 %v257
    %851 = vmatprep.subr.bf16.mxu0 0
    %852 = vmatpush1.bf16.msra.mxu0 %v258
    %853 = vmatprep.subr.bf16.mxu0 0
    %854 = vmatpush1.bf16.msra.mxu0 0
    %855 = vmatprep.subr.bf16.mxu0 0
    %856 = vmatpush1.bf16.msra.mxu0 0
    %857 = vmatprep.subr.bf16.mxu0 0
    %858 = vmatpush1.bf16.msra.mxu0 0
    %859 = vmatprep.subr.bf16.mxu0 0
    %860 = vmatpush1.bf16.msra.mxu0 0
    %861 = vmatprep.subr.bf16.mxu0 0
    %862 = vmatpush1.bf16.msra.mxu0 0
    %863 = vmatprep.subr.bf16.mxu0 0
    %864 = vmatpush1.bf16.msra.mxu0 0
    %865 = vmatprep.subr.bf16.mxu0 0
    %866 = vmatpush1.bf16.msra.mxu0 0
    %867 = vmatprep.subr.bf16.mxu0 0
    %868 = vmatpush1.bf16.msra.mxu0 0
    %869 = vmatprep.mubr.bf16.mxu0 0
    %870 = vmatmul.mubr.bf16.gmra.mrb[0].mxu0 %v836
    %v871 = vpop.f32.mrb[0].mxu0
    %v872 = vadd.f32 %v115, %v871
    %v873 = vpop.f32.mrb[0].mxu0
    %v874 = vpop.f32.mrb[0].mxu0
    %v875 = vpop.f32.mrb[0].mxu0
    %876 = vdwg.mxu0
    %v877 = vmul.f32 %v784, 0.9
    %v878 = vadd.f32 %v877, %v872
    %v879 = vsub.f32 %v878, %v787
    %vm880 = vcmp.gt.f32.partialorder %v879, 1.0
    %v881 = vsel %vm880, 1, 0
    %v882 = vcvt.s32.f32 %v881
    %s883 = scalar_lea.vmem [#allocation4], 28
    %v884 = vld [vmem:[%s883] sm:$0xf]
    %885 = vmatprep.subr.bf16.mxu0 0
    %886 = vmatpush1.bf16.msra.mxu0 %v156
    %887 = vmatprep.subr.bf16.mxu0 0
    %888 = vmatpush1.bf16.msra.mxu0 %v157
    %889 = vmatprep.subr.bf16.mxu0 0
    %890 = vmatpush1.bf16.msra.mxu0 %v158
    %891 = vmatprep.subr.bf16.mxu0 0
    %892 = vmatpush1.bf16.msra.mxu0 %v159
    %893 = vmatprep.subr.bf16.mxu0 0
    %894 = vmatpush1.bf16.msra.mxu0 %v160
    %895 = vmatprep.subr.bf16.mxu0 0
    %896 = vmatpush1.bf16.msra.mxu0 %v161
    %897 = vmatprep.subr.bf16.mxu0 0
    %898 = vmatpush1.bf16.msra.mxu0 %v162
    %899 = vmatprep.subr.bf16.mxu0 0
    %900 = vmatpush1.bf16.msra.mxu0 %v163
    %901 = vmatprep.subr.bf16.mxu0 0
    %902 = vmatpush1.bf16.msra.mxu0 0
    %903 = vmatprep.subr.bf16.mxu0 0
    %904 = vmatpush1.bf16.msra.mxu0 0
    %905 = vmatprep.subr.bf16.mxu0 0
    %906 = vmatpush1.bf16.msra.mxu0 0
    %907 = vmatprep.subr.bf16.mxu0 0
    %908 = vmatpush1.bf16.msra.mxu0 0
    %909 = vmatprep.subr.bf16.mxu0 0
    %910 = vmatpush1.bf16.msra.mxu0 0
    %911 = vmatprep.subr.bf16.mxu0 0
    %912 = vmatpush1.bf16.msra.mxu0 0
    %913 = vmatprep.subr.bf16.mxu0 0
    %914 = vmatpush1.bf16.msra.mxu0 0
    %915 = vmatprep.subr.bf16.mxu0 0
    %916 = vmatpush1.bf16.msra.mxu0 0
    %917 = vmatprep.mubr.bf16.mxu0 0
    %918 = vmatmul.mubr.bf16.gmra.mrb[0].mxu0 %v884
    %v919 = vpop.f32.mrb[0].mxu0
    %v920 = vadd.f32 %v108, %v919
    %v921 = vpop.f32.mrb[0].mxu0
    %v922 = vpop.f32.mrb[0].mxu0
    %v923 = vpop.f32.mrb[0].mxu0
    %924 = vdwg.mxu0
    %v925 = vmul.f32 %v832, 0.9
    %v926 = vadd.f32 %v925, %v920
    %v927 = vsub.f32 %v926, %v835
    %vm928 = vcmp.gt.f32.partialorder %v927, 1.0
    %v929 = vsel %vm928, 1, 0
    %v930 = vcvt.s32.f32 %v929
    %v931 = vpack.c.bf16 %v930, %v930
    %932 = vmatprep.subr.bf16.mxu0 0
    %933 = vmatpush1.bf16.msra.mxu0 %v251
    %934 = vmatprep.subr.bf16.mxu0 0
    %935 = vmatpush1.bf16.msra.mxu0 %v252
    %936 = vmatprep.subr.bf16.mxu0 0
    %937 = vmatpush1.bf16.msra.mxu0 %v253
    %938 = vmatprep.subr.bf16.mxu0 0
    %939 = vmatpush1.bf16.msra.mxu0 %v254
    %940 = vmatprep.subr.bf16.mxu0 0
    %941 = vmatpush1.bf16.msra.mxu0 %v255
    %942 = vmatprep.subr.bf16.mxu0 0
    %943 = vmatpush1.bf16.msra.mxu0 %v256
    %944 = vmatprep.subr.bf16.mxu0 0
    %945 = vmatpush1.bf16.msra.mxu0 %v257
    %946 = vmatprep.subr.bf16.mxu0 0
    %947 = vmatpush1.bf16.msra.mxu0 %v258
    %948 = vmatprep.subr.bf16.mxu0 0
    %949 = vmatpush1.bf16.msra.mxu0 0
    %950 = vmatprep.subr.bf16.mxu0 0
    %951 = vmatpush1.bf16.msra.mxu0 0
    %952 = vmatprep.subr.bf16.mxu0 0
    %953 = vmatpush1.bf16.msra.mxu0 0
    %954 = vmatprep.subr.bf16.mxu0 0
    %955 = vmatpush1.bf16.msra.mxu0 0
    %956 = vmatprep.subr.bf16.mxu0 0
    %957 = vmatpush1.bf16.msra.mxu0 0
    %958 = vmatprep.subr.bf16.mxu0 0
    %959 = vmatpush1.bf16.msra.mxu0 0
    %960 = vmatprep.subr.bf16.mxu0 0
    %961 = vmatpush1.bf16.msra.mxu0 0
    %962 = vmatprep.subr.bf16.mxu0 0
    %963 = vmatpush1.bf16.msra.mxu0 0
    %964 = vmatprep.mubr.bf16.mxu0 0
    %965 = vmatmul.mubr.bf16.gmra.mrb[0].mxu0 %v931
    %v966 = vpop.f32.mrb[0].mxu0
    %v967 = vadd.f32 %v115, %v966
    %v968 = vpop.f32.mrb[0].mxu0
    %v969 = vpop.f32.mrb[0].mxu0
    %v970 = vpop.f32.mrb[0].mxu0
    %971 = vdwg.mxu0
    %v972 = vmul.f32 %v879, 0.9
    %v973 = vadd.f32 %v972, %v967
    %v974 = vsub.f32 %v973, %v882
    %975 = vst [vmem:[#allocation2] sm:$0xff] %v927
    %976 = vst [vmem:[#allocation3] sm:$0xff] %v974
    // Predicated region
    $region38: #{tpu_custom_call.1} parent=1 // pred_check
      %p977 = pneg %p63
    $region39: #{tpu_custom_call.1} parent=1 // pred_check_branch
      %979 = sbr.rel (%p977) target = $region41
    $region40: #{tpu_custom_call.1} parent=1 // pred_region
      %980 = vst [vmem:[#allocation10] sm:$0xff] %v974
    $region41: #{tpu_custom_call.1} parent=1 // pred_fallthru
      _
    // Predicated region
    $region42: #{tpu_custom_call.1} parent=1 // pred_check
      _
    $region43: #{tpu_custom_call.1} parent=1 // pred_check_branch
      %982 = sbr.rel (0) target = $region45
    $region44: #{tpu_custom_call.1} parent=1 // pred_region
      %s984 = ssub.s32 128, 128
      %985 = vsyncadd [#allocation6], %s984
      %s987 = sshll.u32 [#allocation10], 4
      %s988 = int_to_ptr.vmem [resolvable:$true] %s987
      %990 = dma.vmem_to_hbm [thread:$0]  %s988, 128, %s5, [#allocation6]
    $region45: #{tpu_custom_call.1} parent=1 // pred_fallthru
      _
    // Predicated region
    $region46: #{tpu_custom_call.1} parent=1 // pred_check
      _
    $region47: #{tpu_custom_call.1} parent=1 // pred_check_branch
      %992 = sbr.rel (0) target = $region49
    $region48: #{tpu_custom_call.1} parent=1 // pred_region
      %993 = dma.done [#allocation6], 128
    $region49: #{tpu_custom_call.1} parent=1 // pred_fallthru
      _
    %994 = vsyncpa [#allocation5], 1
    %995 = vsyncpa [#allocation8], 1
    %996 = vsyncpa [#allocation6], 1

</llo_original>
